<compile_context>
chip_gen: v7x
topology: tpu7x:2x2x1
jax: 0.10.0
libtpu: 0.0.40
codegen_flags: <defaults>
</compile_context>

<pallas_src>
import jax
import jax.numpy as jnp
import numpy as np
from jax import lax
from jax.experimental import pallas as pl
from jax.experimental.pallas import tpu as pltpu


OC = 256  # output channels per branch
_BRANCH_SPECS = [  # (kernel_size, dilation, padding) -- matches the PyTorch module
    (1, 1, 0),
    (3, 3, 3),
    (3, 5, 5),
    (3, 7, 7),
]


def _make_aspp_kernel(nb, oc):
    """One grid step == one (batch, row-tile) pair, ALL branches fused.

    p_ref : (1, nb, rt, K)   bf16   branch-stacked im2col patches
    w_ref : (nb, K, oc)      bf16   BN-scale-folded weights (resident)
    b_ref : (1, nb*oc)       f32    fused conv+BN bias row (resident)
    o_ref : (1, rt, nb*oc)   f32    concatenated output slab
    """
    def kernel(p_ref, w_ref, b_ref, o_ref):
        for b in range(nb):  # nb == 4, intentionally unrolled
            acc = jnp.dot(p_ref[0, b], w_ref[b],
                          preferred_element_type=jnp.float32)        # (rt, oc) f32
            bias = b_ref[:, b * oc:(b + 1) * oc]                      # (1, oc)  f32
            o_ref[0, :, b * oc:(b + 1) * oc] = jnp.maximum(acc + bias, 0.0)
    return kernel


def _im2col(x_nhwc, ksize, dilation, padding, k_out):
    """(N,H,W,C) -> (N, H*W, k_out) dilated im2col (k_out = 9*C; 1x1 branch zero-fills)."""
    N, H, W, C = x_nhwc.shape
    p = padding
    xp = jnp.pad(x_nhwc, ((0, 0), (p, p), (p, p), (0, 0))) if p else x_nhwc
    cols = []
    for ky in range(ksize):
        for kx in range(ksize):
            cols.append(xp[:, ky * dilation:ky * dilation + H,
                           kx * dilation:kx * dilation + W, :])
    patch = jnp.concatenate(cols, axis=-1).reshape(N, H * W, ksize * ksize * C)
    if patch.shape[-1] < k_out:
        patch = jnp.pad(patch, ((0, 0), (0, 0), (0, k_out - patch.shape[-1])))
    return patch


def init_aspp_params(key, in_c, out_c=OC):
    """Deterministic synthetic parameters for the 4 branches (conv + BN(eval) folded)."""
    eps = 1e-5
    k_full = 9 * in_c
    branches = []
    for ksize, dil, pad in _BRANCH_SPECS:
        key, k_w, k_b, k_g, k_bt, k_m, k_v = jax.random.split(key, 7)
        w = jax.random.normal(k_w, (ksize, ksize, in_c, out_c), jnp.float32) * 0.05
        conv_b = jax.random.normal(k_b, (out_c,), jnp.float32) * 0.05
        gamma = 1.0 + 0.1 * jax.random.normal(k_g, (out_c,), jnp.float32)
        beta = 0.1 * jax.random.normal(k_bt, (out_c,), jnp.float32)
        mean = 0.1 * jax.random.normal(k_m, (out_c,), jnp.float32)
        var = jnp.abs(jax.random.normal(k_v, (out_c,), jnp.float32)) * 0.5 + 0.5
        # BN(eval) + bias fold: y = relu(conv(x, w*s) + (conv_b*s + beta - mean*s))
        s = gamma / jnp.sqrt(var + eps)
        bias_eff = conv_b * s + (beta - mean * s)
        w_flat = w.reshape(ksize * ksize * in_c, out_c) * s[None, :]   # scale folded in
        w_flat = jnp.pad(w_flat, ((0, k_full - w_flat.shape[0]), (0, 0)))  # (9C, OC)
        branches.append(dict(w=w, scale=s, bias=bias_eff, w_flat=w_flat,
                             ksize=ksize, dil=dil, pad=pad))
    return branches


def aspp_forward(x_nchw, params, row_tile=256):
    """Fused ASPP forward.  Input NCHW (PyTorch convention), output NCHW (N, 1024, H, W)."""
    N, C, H, W = x_nchw.shape
    HW = H * W
    nb = len(params)
    K = 9 * C

    # bf16 operands halve HBM/DMA bytes and hit the native MXU path; accumulation is f32.
    x_nhwc = jnp.transpose(x_nchw, (0, 2, 3, 1)).astype(jnp.bfloat16)
    patches = jnp.stack(
        [_im2col(x_nhwc, p["ksize"], p["dil"], p["pad"], K) for p in params],
        axis=1)                                                   # (N, nb, HW, K) bf16
    w_stack = jnp.stack([p["w_flat"] for p in params],
                        axis=0).astype(jnp.bfloat16)              # (nb, K, OC) bf16
    bias_all = jnp.concatenate([p["bias"] for p in params]).reshape(1, nb * OC)  # f32

    rt = min(row_tile, HW)
    if HW % rt:
        rt = HW  # TODO(synk): ragged HW row-tiling (masked stores) not implemented.

    out = pl.pallas_call(
        _make_aspp_kernel(nb, OC),
        out_shape=jax.ShapeDtypeStruct((N, HW, nb * OC), jnp.float32),
        grid=(N, HW // rt),
        in_specs=[
            pl.BlockSpec((1, nb, rt, K), lambda n, r: (n, 0, r, 0)),
            pl.BlockSpec((nb, K, OC), lambda n, r: (0, 0, 0)),    # resident weights
            pl.BlockSpec((1, nb * OC), lambda n, r: (0, 0)),      # resident bias row
        ],
        out_specs=pl.BlockSpec((1, rt, nb * OC), lambda n, r: (n, r, 0)),
        compiler_params=pltpu.CompilerParams(
            dimension_semantics=("parallel", "parallel"),
            vmem_limit_bytes=32 * 1024 * 1024),
    )(patches, w_stack, bias_all)

    y_nhwc = out.reshape(N, H, W, nb * OC)
    # Kernel output stays NHWC / 1024-lane-dense; the NCHW transpose (PyTorch contract)
    # is a single cheap XLA op outside the kernel.
    return jnp.transpose(y_nhwc, (0, 3, 1, 2))


def aspp_reference(x_nchw, params):
    """Pure-JAX f32 reference (lax conv) matching the PyTorch module in eval mode."""
    x_nhwc = jnp.transpose(x_nchw, (0, 2, 3, 1))
    outs = []
    for p in params:
        d, pad = p["dil"], p["pad"]
        conv = lax.conv_general_dilated(
            x_nhwc, p["w"],
            window_strides=(1, 1),
            padding=[(pad, pad), (pad, pad)],
            rhs_dilation=(d, d),
            dimension_numbers=("NHWC", "HWIO", "NHWC"))
        outs.append(jnp.maximum(conv * p["scale"] + p["bias"], 0.0))
    y = jnp.concatenate(outs, axis=-1)
    return jnp.transpose(y, (0, 3, 1, 2))


if __name__ == "__main__":
    key = jax.random.PRNGKey(0)
    k_x, k_p = jax.random.split(key)

    N, C, H, W = 2, 4, 16, 16
    x = jax.random.normal(k_x, (N, C, H, W), jnp.float32)
    params = init_aspp_params(k_p, in_c=C, out_c=OC)

    out = jax.block_until_ready(aspp_forward(x, params))
    ref = jax.block_until_ready(aspp_reference(x, params))

    assert out.shape == (N, 4 * OC, H, W), out.shape
    # bf16 operands (f32 accumulation) vs the f32 reference -> relaxed tolerance.
    np.testing.assert_allclose(np.asarray(out), np.asarray(ref),
                               rtol=2e-2, atol=2e-2)
    print("KERNEL_OK")
</pallas_src>

<mosaic_0001>
module attributes {stable_mosaic.version = 11 : i64} {
  func.func @kernel(%arg0: i32, %arg1: i32, %arg2: memref<1x4x256x36xbf16, #tpu.memory_space<vmem>>, %arg3: memref<4x36x256xbf16, #tpu.memory_space<vmem>>, %arg4: memref<1x1024xf32, #tpu.memory_space<vmem>>, %arg5: memref<1x256x1024xf32, #tpu.memory_space<vmem>>) attributes {dimension_semantics = [#tpu.dimension_semantics<parallel>, #tpu.dimension_semantics<parallel>], iteration_bounds = array<i64: 2, 1>, scalar_prefetch = 0 : i64, scratch_operands = 0 : i64, tpu.core_type = #tpu.core_type<tc>, window_params = [{transform_indices = @transform_0, window_bounds = array<i64: 1, 4, 256, 36>}, {pipeline_mode = #tpu.pipeline_mode<synchronous>, transform_indices = @transform_1, window_bounds = array<i64: 4, 36, 256>}, {pipeline_mode = #tpu.pipeline_mode<synchronous>, transform_indices = @transform_2, window_bounds = array<i64: 1, 1024>}, {transform_indices = @transform_3, window_bounds = array<i64: 1, 256, 1024>}]} {
    %c0 = arith.constant 0 : index
    %c0_0 = arith.constant 0 : index
    %c0_1 = arith.constant 0 : index
    %c0_2 = arith.constant 0 : index
    %0 = vector.load %arg2[%c0, %c0_0, %c0_1, %c0_2] : memref<1x4x256x36xbf16, #tpu.memory_space<vmem>>, vector<1x1x256x36xbf16>
    %1 = vector.shape_cast %0 : vector<1x1x256x36xbf16> to vector<256x36xbf16>
    %c0_3 = arith.constant 0 : index
    %c0_4 = arith.constant 0 : index
    %c0_5 = arith.constant 0 : index
    %2 = vector.load %arg3[%c0_3, %c0_4, %c0_5] : memref<4x36x256xbf16, #tpu.memory_space<vmem>>, vector<1x36x256xbf16>
    %3 = vector.shape_cast %2 : vector<1x36x256xbf16> to vector<36x256xbf16>
    %cst = arith.constant dense<0.000000e+00> : vector<256x256xf32>
    %4 = tpu.matmul %1, %3, %cst {dimension_numbers = #tpu.dot_dimension_numbers<[1], [0], [0], [1], [0, 0, 1, 1], [], []>} : vector<256x36xbf16>, vector<36x256xbf16>, vector<256x256xf32> -> vector<256x256xf32>
    %c0_6 = arith.constant 0 : index
    %c0_7 = arith.constant 0 : index
    %5 = vector.load %arg4[%c0_6, %c0_7] : memref<1x1024xf32, #tpu.memory_space<vmem>>, vector<1x256xf32>
    %6 = vector.broadcast %5 : vector<1x256xf32> to vector<256x256xf32>
    %7 = arith.addf %4, %6 : vector<256x256xf32>
    %cst_8 = arith.constant 0.000000e+00 : f32
    %8 = vector.broadcast %cst_8 : f32 to vector<256x256xf32>
    %9 = arith.maximumf %7, %8 : vector<256x256xf32>
    %c0_9 = arith.constant 0 : index
    %c0_10 = arith.constant 0 : index
    %c0_11 = arith.constant 0 : index
    %10 = vector.load %arg5[%c0_9, %c0_10, %c0_11] : memref<1x256x1024xf32, #tpu.memory_space<vmem>>, vector<1x256x256xf32>
    %11 = vector.shape_cast %10 : vector<1x256x256xf32> to vector<256x256xf32>
    %12 = vector.shape_cast %9 : vector<256x256xf32> to vector<1x256x256xf32>
    tpu.vector_store %arg5[%c0_9, %c0_10, %c0_11], %12 {strides = array<i32>} : memref<1x256x1024xf32, #tpu.memory_space<vmem>>, vector<1x256x256xf32>,
    %c0_12 = arith.constant 0 : index
    %c1 = arith.constant 1 : index
    %c0_13 = arith.constant 0 : index
    %c0_14 = arith.constant 0 : index
    %13 = vector.load %arg2[%c0_12, %c1, %c0_13, %c0_14] : memref<1x4x256x36xbf16, #tpu.memory_space<vmem>>, vector<1x1x256x36xbf16>
    %14 = vector.shape_cast %13 : vector<1x1x256x36xbf16> to vector<256x36xbf16>
    %c1_15 = arith.constant 1 : index
    %c0_16 = arith.constant 0 : index
    %c0_17 = arith.constant 0 : index
    %15 = vector.load %arg3[%c1_15, %c0_16, %c0_17] : memref<4x36x256xbf16, #tpu.memory_space<vmem>>, vector<1x36x256xbf16>
    %16 = vector.shape_cast %15 : vector<1x36x256xbf16> to vector<36x256xbf16>
    %cst_18 = arith.constant dense<0.000000e+00> : vector<256x256xf32>
    %17 = tpu.matmul %14, %16, %cst_18 {dimension_numbers = #tpu.dot_dimension_numbers<[1], [0], [0], [1], [0, 0, 1, 1], [], []>} : vector<256x36xbf16>, vector<36x256xbf16>, vector<256x256xf32> -> vector<256x256xf32>
    %c0_19 = arith.constant 0 : index
    %c256 = arith.constant 256 : index
    %18 = vector.load %arg4[%c0_19, %c256] : memref<1x1024xf32, #tpu.memory_space<vmem>>, vector<1x256xf32>
    %19 = vector.broadcast %18 : vector<1x256xf32> to vector<256x256xf32>
    %20 = arith.addf %17, %19 : vector<256x256xf32>
    %cst_20 = arith.constant 0.000000e+00 : f32
    %21 = vector.broadcast %cst_20 : f32 to vector<256x256xf32>
    %22 = arith.maximumf %20, %21 : vector<256x256xf32>
    %c0_21 = arith.constant 0 : index
    %c0_22 = arith.constant 0 : index
    %c256_23 = arith.constant 256 : index
    %23 = vector.load %arg5[%c0_21, %c0_22, %c256_23] : memref<1x256x1024xf32, #tpu.memory_space<vmem>>, vector<1x256x256xf32>
    %24 = vector.shape_cast %23 : vector<1x256x256xf32> to vector<256x256xf32>
    %25 = vector.shape_cast %22 : vector<256x256xf32> to vector<1x256x256xf32>
    tpu.vector_store %arg5[%c0_21, %c0_22, %c256_23], %25 {strides = array<i32>} : memref<1x256x1024xf32, #tpu.memory_space<vmem>>, vector<1x256x256xf32>,
    %c0_24 = arith.constant 0 : index
    %c2 = arith.constant 2 : index
    %c0_25 = arith.constant 0 : index
    %c0_26 = arith.constant 0 : index
    %26 = vector.load %arg2[%c0_24, %c2, %c0_25, %c0_26] : memref<1x4x256x36xbf16, #tpu.memory_space<vmem>>, vector<1x1x256x36xbf16>
    %27 = vector.shape_cast %26 : vector<1x1x256x36xbf16> to vector<256x36xbf16>
    %c2_27 = arith.constant 2 : index
    %c0_28 = arith.constant 0 : index
    %c0_29 = arith.constant 0 : index
    %28 = vector.load %arg3[%c2_27, %c0_28, %c0_29] : memref<4x36x256xbf16, #tpu.memory_space<vmem>>, vector<1x36x256xbf16>
    %29 = vector.shape_cast %28 : vector<1x36x256xbf16> to vector<36x256xbf16>
    %cst_30 = arith.constant dense<0.000000e+00> : vector<256x256xf32>
    %30 = tpu.matmul %27, %29, %cst_30 {dimension_numbers = #tpu.dot_dimension_numbers<[1], [0], [0], [1], [0, 0, 1, 1], [], []>} : vector<256x36xbf16>, vector<36x256xbf16>, vector<256x256xf32> -> vector<256x256xf32>
    %c0_31 = arith.constant 0 : index
    %c512 = arith.constant 512 : index
    %31 = vector.load %arg4[%c0_31, %c512] : memref<1x1024xf32, #tpu.memory_space<vmem>>, vector<1x256xf32>
    %32 = vector.broadcast %31 : vector<1x256xf32> to vector<256x256xf32>
    %33 = arith.addf %30, %32 : vector<256x256xf32>
    %cst_32 = arith.constant 0.000000e+00 : f32
    %34 = vector.broadcast %cst_32 : f32 to vector<256x256xf32>
    %35 = arith.maximumf %33, %34 : vector<256x256xf32>
    %c0_33 = arith.constant 0 : index
    %c0_34 = arith.constant 0 : index
    %c512_35 = arith.constant 512 : index
    %36 = vector.load %arg5[%c0_33, %c0_34, %c512_35] : memref<1x256x1024xf32, #tpu.memory_space<vmem>>, vector<1x256x256xf32>
    %37 = vector.shape_cast %36 : vector<1x256x256xf32> to vector<256x256xf32>
    %38 = vector.shape_cast %35 : vector<256x256xf32> to vector<1x256x256xf32>
    tpu.vector_store %arg5[%c0_33, %c0_34, %c512_35], %38 {strides = array<i32>} : memref<1x256x1024xf32, #tpu.memory_space<vmem>>, vector<1x256x256xf32>,
    %c0_36 = arith.constant 0 : index
    %c3 = arith.constant 3 : index
    %c0_37 = arith.constant 0 : index
    %c0_38 = arith.constant 0 : index
    %39 = vector.load %arg2[%c0_36, %c3, %c0_37, %c0_38] : memref<1x4x256x36xbf16, #tpu.memory_space<vmem>>, vector<1x1x256x36xbf16>
    %40 = vector.shape_cast %39 : vector<1x1x256x36xbf16> to vector<256x36xbf16>
    %c3_39 = arith.constant 3 : index
    %c0_40 = arith.constant 0 : index
    %c0_41 = arith.constant 0 : index
    %41 = vector.load %arg3[%c3_39, %c0_40, %c0_41] : memref<4x36x256xbf16, #tpu.memory_space<vmem>>, vector<1x36x256xbf16>
    %42 = vector.shape_cast %41 : vector<1x36x256xbf16> to vector<36x256xbf16>
    %cst_42 = arith.constant dense<0.000000e+00> : vector<256x256xf32>
    %43 = tpu.matmul %40, %42, %cst_42 {dimension_numbers = #tpu.dot_dimension_numbers<[1], [0], [0], [1], [0, 0, 1, 1], [], []>} : vector<256x36xbf16>, vector<36x256xbf16>, vector<256x256xf32> -> vector<256x256xf32>
    %c0_43 = arith.constant 0 : index
    %c768 = arith.constant 768 : index
    %44 = vector.load %arg4[%c0_43, %c768] : memref<1x1024xf32, #tpu.memory_space<vmem>>, vector<1x256xf32>
    %45 = vector.broadcast %44 : vector<1x256xf32> to vector<256x256xf32>
    %46 = arith.addf %43, %45 : vector<256x256xf32>
    %cst_44 = arith.constant 0.000000e+00 : f32
    %47 = vector.broadcast %cst_44 : f32 to vector<256x256xf32>
    %48 = arith.maximumf %46, %47 : vector<256x256xf32>
    %c0_45 = arith.constant 0 : index
    %c0_46 = arith.constant 0 : index
    %c768_47 = arith.constant 768 : index
    %49 = vector.load %arg5[%c0_45, %c0_46, %c768_47] : memref<1x256x1024xf32, #tpu.memory_space<vmem>>, vector<1x256x256xf32>
    %50 = vector.shape_cast %49 : vector<1x256x256xf32> to vector<256x256xf32>
    %51 = vector.shape_cast %48 : vector<256x256xf32> to vector<1x256x256xf32>
    tpu.vector_store %arg5[%c0_45, %c0_46, %c768_47], %51 {strides = array<i32>} : memref<1x256x1024xf32, #tpu.memory_space<vmem>>, vector<1x256x256xf32>,
    return
  }
  func.func @transform_0(%arg0: i32, %arg1: i32) -> (i32, i32, i32, i32) {
    %c0_i32 = arith.constant 0 : i32
    %c0_i32_0 = arith.constant 0 : i32
    %c0_i32_1 = arith.constant 0 : i32
    return %arg0, %c0_i32, %arg1, %c0_i32_0 : i32, i32, i32, i32
  }
  func.func @transform_1(%arg0: i32, %arg1: i32) -> (i32, i32, i32) {
    %c0_i32 = arith.constant 0 : i32
    %c0_i32_0 = arith.constant 0 : i32
    %c0_i32_1 = arith.constant 0 : i32
    %c0_i32_2 = arith.constant 0 : i32
    return %c0_i32, %c0_i32_0, %c0_i32_1 : i32, i32, i32
  }
  func.func @transform_2(%arg0: i32, %arg1: i32) -> (i32, i32) {
    %c0_i32 = arith.constant 0 : i32
    %c0_i32_0 = arith.constant 0 : i32
    %c0_i32_1 = arith.constant 0 : i32
    return %c0_i32, %c0_i32_0 : i32, i32
  }
  func.func @transform_3(%arg0: i32, %arg1: i32) -> (i32, i32, i32) {
    %c0_i32 = arith.constant 0 : i32
    %c0_i32_0 = arith.constant 0 : i32
    return %arg0, %arg1, %c0_i32 : i32, i32, i32
  }
}

</mosaic_0001>

<llo_original>
// kernel: tpu_custom_call.1
$region0: #{tpu_custom_call.1}
  #allocation0 [shape = 'u32[]', space=smem, size = 0x4, offset = 0x4, fixed_abs, tag = 'smem constant byte address 0x4 - core index']
  #allocation1 [shape = 'u32[144,128]{1,0:T(1,128)}', space=vmem, size = 0x12000, scoped, tag = 'internal scratch']
  %s0 = inlined_call_operand.vmem [shape: bf16[2,4,256,36], index: 0, kind: input, shape index: {}]
  %s1 = inlined_call_operand.vmem [shape: bf16[4,36,256], index: 1, kind: input, shape index: {}]
  %s2 = inlined_call_operand.hbm [shape: f32[1,1024], index: 2, kind: input, shape index: {}]
  %s3 = inlined_call_operand.hbm [shape: f32[2,256,1024], index: 3, kind: output, shape index: {}]
  %s4 = sld [smem:[#allocation0]]
  $region49: #{tpu_custom_call.1} parent=0
    _
  %s6 = ssub.s32 1, %s4
  %s7 = scalar_select 0, %s6, %s4
  $region1: #{tpu_custom_call.1} parent=0
    #allocation2 [shape = 'u8[4096]{0}', space=vmem, size = 0x1000, scoped, tag = 'input window, operand 2, single buffered']
    #allocation3 [shape = 's32[2]{0}', space=sflag, size = 0x8, scoped, tag = 'scoped memory for tpu_custom_call.1']
    #allocation4 [shape = 's32[2]{0}', space=sflag, size = 0x8, scoped, tag = 'scoped memory for tpu_custom_call.1']
    #allocation5 [shape = 'u8[2097152]{0}', space=vmem, size = 0x200000, scoped, tag = 'output window, operand 0']
    %8 = vsyncpa [#allocation3], 0
    %9 = vsyncpa [#allocation4], 0
    %s10 = scalar_lea.sflag [#allocation4], 1
    %11 = vsyncpa %s10, 0
    loop: start=0, step=1, limit=4
    $region2: #{tpu_custom_call.1} parent=1 // loop_pre_header
      _
    $region3: #{tpu_custom_call.1} parent=1 // loop_header
      %s13 = sphi 0, %s17
      %p14 = scmp.ge.s32.totalorder %s13, 4
      %s20 = sphi 0, %s32
      %s21 = sphi 0, %s28
      %s22 = sphi 0, %s20
      %s23 = sphi 0, %s21
      %s24 = sphi 0, %s22
      %s25 = sphi 0, %s23
      %s37 = sphi 0, %s39
      %s40 = sphi 0, %s37
      %s41 = sphi 0, %s40
      %s57 = sphi 0, %s41
      %s61 = sphi 0, %s61
      %s63 = sphi 0, %s61
      %s64 = sphi 0, %s63
      %s78 = sphi 0, %s64
      %s82 = sphi 0, %s82
      %s84 = sphi 0, %s82
      %s85 = sphi 0, %s84
      %s99 = sphi 0, %s85
      %s107 = sphi 0, %s109
      %s110 = sphi 0, %s107
      %s111 = sphi 0, %s110
      %s127 = sphi 0, %s111
    $region4: #{tpu_custom_call.1} parent=1 // loop_header_branch
      %16 = sbr.rel (%p14) target = $region8
    $region5: #{tpu_custom_call.1} parent=1 // loop_body
      %s18 = ssub.s32 %s13, 1
      %s19 = ssub.s32 %s13, 2
      %s26 = sadd.s32 1, %s21
      %p27 = scmp.ge.s32.totalorder %s26, 1
      %s28 = scalar_select %p27, 0, %s26
      %s29 = sadd.s32 1, %s20
      %s30 = scalar_select %p27, %s29, %s20
      %p31 = scmp.ge.s32.totalorder %s30, 2
      %s32 = scalar_select %p31, 0, %s30
      %s33 = ssub.s32 %s20, %s32
      %s34 = ssub.s32 %s21, %s28
      %s35 = sor.u32 %s33, %s34
      %p36 = scmp.eq.s32.totalorder %s35, 0
      %s38 = sadd.s32 %s37, 1
      %s39 = scalar_select %p36, %s37, %s38
      %p42 = pneg %p36
      %p43 = scmp.eq.s32.totalorder %s13, 1
      %p44 = por %p42, %p43
      %p45 = scmp.ne.s32.totalorder %s37, %s40
      %p46 = scmp.eq.s32.totalorder %s13, 0
      %p47 = por %p45, %p46
      %p48 = scmp.ne.s32.totalorder %s37, %s40
      %p49 = scmp.eq.s32.totalorder %s18, 1
      %p50 = por %p48, %p49
      %p51 = scmp.ne.s32.totalorder %s40, %s41
      %p52 = scmp.eq.s32.totalorder %s18, 0
      %p53 = por %p51, %p52
      %p54 = scmp.ne.s32.totalorder %s40, %s41
      %p55 = scmp.eq.s32.totalorder %s19, 1
      %p56 = por %p54, %p55
      %p58 = scmp.ne.s32.totalorder %s41, %s57
      %p59 = scmp.eq.s32.totalorder %s19, 0
      %p60 = por %p58, %p59
      %s62 = sadd.s32 %s61, 1
      %p65 = scmp.eq.s32.totalorder %s13, 1
      %p66 = scmp.ne.s32.totalorder %s61, %s63
      %p67 = scmp.eq.s32.totalorder %s13, 0
      %p68 = por %p66, %p67
      %p69 = scmp.ne.s32.totalorder %s61, %s63
      %p70 = scmp.eq.s32.totalorder %s18, 1
      %p71 = por %p69, %p70
      %p72 = scmp.ne.s32.totalorder %s63, %s64
      %p73 = scmp.eq.s32.totalorder %s18, 0
      %p74 = por %p72, %p73
      %p75 = scmp.ne.s32.totalorder %s63, %s64
      %p76 = scmp.eq.s32.totalorder %s19, 1
      %p77 = por %p75, %p76
      %p79 = scmp.ne.s32.totalorder %s64, %s78
      %p80 = scmp.eq.s32.totalorder %s19, 0
      %p81 = por %p79, %p80
      %s83 = sadd.s32 %s82, 1
      %p86 = scmp.eq.s32.totalorder %s13, 1
      %p87 = scmp.ne.s32.totalorder %s82, %s84
      %p88 = scmp.eq.s32.totalorder %s13, 0
      %p89 = por %p87, %p88
      %p90 = scmp.ne.s32.totalorder %s82, %s84
      %p91 = scmp.eq.s32.totalorder %s18, 1
      %p92 = por %p90, %p91
      %p93 = scmp.ne.s32.totalorder %s84, %s85
      %p94 = scmp.eq.s32.totalorder %s18, 0
      %p95 = por %p93, %p94
      %p96 = scmp.ne.s32.totalorder %s84, %s85
      %p97 = scmp.eq.s32.totalorder %s19, 1
      %p98 = por %p96, %p97
      %p100 = scmp.ne.s32.totalorder %s85, %s99
      %p101 = scmp.eq.s32.totalorder %s19, 0
      %p102 = por %p100, %p101
      %s103 = ssub.s32 %s20, %s32
      %s104 = ssub.s32 %s21, %s28
      %s105 = sor.u32 %s103, %s104
      %p106 = scmp.eq.s32.totalorder %s105, 0
      %s108 = sadd.s32 %s107, 1
      %s109 = scalar_select %p106, %s107, %s108
      %p112 = pneg %p106
      %p113 = scmp.eq.s32.totalorder %s13, 1
      %p114 = por %p112, %p113
      %p115 = scmp.ne.s32.totalorder %s107, %s110
      %p116 = scmp.eq.s32.totalorder %s13, 0
      %p117 = por %p115, %p116
      %p118 = scmp.ne.s32.totalorder %s107, %s110
      %p119 = scmp.eq.s32.totalorder %s18, 1
      %p120 = por %p118, %p119
      %p121 = scmp.ne.s32.totalorder %s110, %s111
      %p122 = scmp.eq.s32.totalorder %s18, 0
      %p123 = por %p121, %p122
      %p124 = scmp.ne.s32.totalorder %s110, %s111
      %p125 = scmp.eq.s32.totalorder %s19, 1
      %p126 = por %p124, %p125
      %p128 = scmp.ne.s32.totalorder %s111, %s127
      %p129 = scmp.eq.s32.totalorder %s19, 0
      %p130 = por %p128, %p129
      %p131 = scmp.le.s32.totalorder 1, %s13
      %p132 = scmp.lt.s32.totalorder %s13, 3
      %p133 = pnand %p131, %p132
      %p134 = pneg %p133
      // Predicated region
      $region9: #{tpu_custom_call.1} parent=5 // pred_check
        _
      $region10: #{tpu_custom_call.1} parent=5 // pred_check_branch
        %136 = sbr.rel (%p133) target = $region12
      $region11: #{tpu_custom_call.1} parent=5 // pred_region
        %s137 = ssub.s32 %s13, 1
        // Predicated region
        $region13: #{tpu_custom_call.1} parent=11 // pred_check
          %p138 = pneg %p74
        $region14: #{tpu_custom_call.1} parent=11 // pred_check_branch
          %140 = sbr.rel (%p138) target = $region16
        $region15: #{tpu_custom_call.1} parent=11 // pred_region
          _
        $region16: #{tpu_custom_call.1} parent=11 // pred_fallthru
          _
        // Predicated region
        $region17: #{tpu_custom_call.1} parent=11 // pred_check
          %p141 = pneg %p95
        $region18: #{tpu_custom_call.1} parent=11 // pred_check_branch
          %143 = sbr.rel (%p141) target = $region20
        $region19: #{tpu_custom_call.1} parent=11 // pred_region
          %s145 = ssub.s32 128, 128
          %146 = vsyncadd [#allocation3], %s145
          %s148 = sshll.u32 [#allocation2], 4
          %s149 = int_to_ptr.vmem [resolvable:$true] %s148
          %151 = dma.hbm_to_vmem [thread:$0]  %s2, 128, %s149, [#allocation3]
        $region20: #{tpu_custom_call.1} parent=11 // pred_fallthru
          _
      $region12: #{tpu_custom_call.1} parent=5 // pred_fallthru
        _
      %p152 = scmp.lt.s32.totalorder %s13, 2
      // Predicated region
      $region21: #{tpu_custom_call.1} parent=5 // pred_check
        %p153 = pneg %p152
      $region22: #{tpu_custom_call.1} parent=5 // pred_check_branch
        %155 = sbr.rel (%p153) target = $region24
      $region23: #{tpu_custom_call.1} parent=5 // pred_region
        // Predicated region
        $region25: #{tpu_custom_call.1} parent=23 // pred_check
          %p156 = pneg %p47
        $region26: #{tpu_custom_call.1} parent=23 // pred_check_branch
          %158 = sbr.rel (%p156) target = $region28
        $region27: #{tpu_custom_call.1} parent=23 // pred_region
          %s159 = smul.u32 32, %s21
          %p160 = scmp.lt.s32.totalorder %s20, 1
          %s161 = scalar_select %p160, %s20, 1
          %p162 = scmp.lt.s32.totalorder %s159, 31
          %s163 = scalar_select %p162, %s159, 31
          %s164 = smul.addr %s161, 128
          %s165 = sadd.s32 %s163, %s164
          %s166 = smul.addr %s165, 4
          %s167 = scalar_lea.vmem %s0, %s166
          %s168 = smul.u32 32, %s21
        $region28: #{tpu_custom_call.1} parent=23 // pred_fallthru
          _
      $region24: #{tpu_custom_call.1} parent=5 // pred_fallthru
        _
      %p169 = scmp.le.s32.totalorder 1, %s13
      %p170 = scmp.lt.s32.totalorder %s13, 3
      %p171 = pnand %p169, %p170
      %p172 = pneg %p171
      // Predicated region
      $region29: #{tpu_custom_call.1} parent=5 // pred_check
        _
      $region30: #{tpu_custom_call.1} parent=5 // pred_check_branch
        %174 = sbr.rel (%p171) target = $region32
      $region31: #{tpu_custom_call.1} parent=5 // pred_region
        %s175 = ssub.s32 %s13, 1
        // Predicated region
        $region33: #{tpu_custom_call.1} parent=31 // pred_check
          %p176 = pneg %p95
        $region34: #{tpu_custom_call.1} parent=31 // pred_check_branch
          %178 = sbr.rel (%p176) target = $region36
        $region35: #{tpu_custom_call.1} parent=31 // pred_region
          %179 = dma.done [#allocation3], 128
        $region36: #{tpu_custom_call.1} parent=31 // pred_fallthru
          _
        %s180 = smul.u32 32, %s23
        %p181 = scmp.lt.s32.totalorder %s22, 1
        %s182 = scalar_select %p181, %s22, 1
        %p183 = scmp.lt.s32.totalorder %s180, 31
        %s184 = scalar_select %p183, %s180, 31
        %s185 = smul.addr %s182, 128
        %s186 = sadd.s32 %s184, %s185
        %s187 = smul.addr %s186, 4
        %s188 = scalar_lea.vmem %s0, %s187
        %p189 = pneg %p53
        %p190 = pneg %p50
        %p191 = pneg %p74
        %p192 = pneg %p71
        %p193 = pneg %p95
        %p194 = pneg %p92
        %p195 = pneg %p123
        %p196 = pneg %p120
        %s197 = sand.u32 %s110, 1
        %s198 = scalar_lea.sflag [#allocation4], %s197
        %s199 = sand.u32 %s110, 1
        %s200 = smul.addr %s199, 2048
        %s201 = scalar_lea.vmem [#allocation5], %s200
        %s202 = smul.u32 32, %s23
        %p203 = scmp.lt.s32.totalorder %s22, 1
        %s204 = scalar_select %p203, %s22, 1
        %p205 = scmp.lt.s32.totalorder %s202, 31
        %s206 = scalar_select %p205, %s202, 31
        %s207 = smul.addr %s204, 128
        %s208 = sadd.s32 %s206, %s207
        %s209 = smul.addr %s208, 4
        %s210 = scalar_lea.vmem %s0, %s209
        %s211 = smul.u32 32, %s23
        %s212 = smul.u32 32, %s23
        %v214 = vld [vmem:[%s210] sm:$0xf]
        %v215 = vld [vmem:[%s210 + $0x4] sm:$0xf]
        %v216 = vld [vmem:[%s210 + $0x8] sm:$0xf]
        %v217 = vld [vmem:[%s210 + $0xc] sm:$0xf]
        %v218 = vld [vmem:[%s210 + $0x10] sm:$0xf]
        %v219 = vld [vmem:[%s210 + $0x14] sm:$0xf]
        %v220 = vld [vmem:[%s210 + $0x18] sm:$0xf]
        %v221 = vld [vmem:[%s210 + $0x1c] sm:$0xf]
        %v222 = vld [vmem:[%s210 + $0x20] sm:$0xf]
        %v223 = vld [vmem:[%s210 + $0x24] sm:$0xf]
        %v224 = vld [vmem:[%s210 + $0x28] sm:$0xf]
        %v225 = vld [vmem:[%s210 + $0x2c] sm:$0xf]
        %v226 = vld [vmem:[%s210 + $0x30] sm:$0xf]
        %v227 = vld [vmem:[%s210 + $0x34] sm:$0xf]
        %v228 = vld [vmem:[%s210 + $0x38] sm:$0xf]
        %v229 = vld [vmem:[%s210 + $0x3c] sm:$0xf]
        %v230 = vld [vmem:[%s210 + $0x40] sm:$0xf]
        %v231 = vld [vmem:[%s210 + $0x44] sm:$0xf]
        %v232 = vld [vmem:[%s210 + $0x48] sm:$0xf]
        %v233 = vld [vmem:[%s210 + $0x4c] sm:$0xf]
        %v234 = vld [vmem:[%s210 + $0x50] sm:$0xf]
        %v235 = vld [vmem:[%s210 + $0x54] sm:$0xf]
        %v236 = vld [vmem:[%s210 + $0x58] sm:$0xf]
        %v237 = vld [vmem:[%s210 + $0x5c] sm:$0xf]
        %v238 = vld [vmem:[%s210 + $0x60] sm:$0xf]
        %v239 = vld [vmem:[%s210 + $0x64] sm:$0xf]
        %v240 = vld [vmem:[%s210 + $0x68] sm:$0xf]
        %v241 = vld [vmem:[%s210 + $0x6c] sm:$0xf]
        %v242 = vld [vmem:[%s210 + $0x70] sm:$0xf]
        %v243 = vld [vmem:[%s210 + $0x74] sm:$0xf]
        %v244 = vld [vmem:[%s210 + $0x78] sm:$0xf]
        %v245 = vld [vmem:[%s210 + $0x7c] sm:$0xf]
        %v246 = vld [vmem:[%s1] sm:$0xff]
        %v247 = vld [vmem:[%s1 + $0x8] sm:$0xff]
        %v248 = vld [vmem:[%s1 + $0x10] sm:$0xff]
        %v249 = vld [vmem:[%s1 + $0x18] sm:$0xff]
        %v250 = vld [vmem:[%s1 + $0x20] sm:$0x33]
        %v251 = vld [vmem:[#allocation2] sm:$0x3]
        %v253 = vlaneseq
        %v254 = vshrl.u32 %v253, 7
        %v255 = vsub.s32 0, %v254
        %v256 = vrot.slane %v251, %v255
        %v257 = vlaneseq
        %v258 = vshrl.u32 %v257, 7
        %v259 = vsub.s32 1, %v258
        %v260 = vrot.slane %v251, %v259
        %v295 = vunpack.c.l.b16 %v214
        %v296 = vunpack.c.l.b16 %v215
        %v297 = vunpack.c.l.b16 %v216
        %v298 = vunpack.c.l.b16 %v217
        %v299 = vunpack.c.l.b16 %v218
        %v300 = vunpack.c.l.b16 %v219
        %v301 = vunpack.c.l.b16 %v220
        %v302 = vunpack.c.l.b16 %v221
        %v303 = vunpack.c.l.b16 %v222
        %v304 = vunpack.c.l.b16 %v223
        %v305 = vunpack.c.l.b16 %v224
        %v306 = vunpack.c.l.b16 %v225
        %v307 = vunpack.c.l.b16 %v226
        %v308 = vunpack.c.l.b16 %v227
        %v309 = vunpack.c.l.b16 %v228
        %v310 = vunpack.c.l.b16 %v229
        %v311 = vunpack.c.l.b16 %v230
        %v312 = vunpack.c.l.b16 %v231
        %v313 = vunpack.c.l.b16 %v232
        %v314 = vunpack.c.l.b16 %v233
        %v315 = vunpack.c.l.b16 %v234
        %v316 = vunpack.c.l.b16 %v235
        %v317 = vunpack.c.l.b16 %v236
        %v318 = vunpack.c.l.b16 %v237
        %v319 = vunpack.c.l.b16 %v238
        %v320 = vunpack.c.l.b16 %v239
        %v321 = vunpack.c.l.b16 %v240
        %v322 = vunpack.c.l.b16 %v241
        %v323 = vunpack.c.l.b16 %v242
        %v324 = vunpack.c.l.b16 %v243
        %v325 = vunpack.c.l.b16 %v244
        %v326 = vunpack.c.l.b16 %v245
        %v327 = vpack.c.b16 %v296, %v295
        %v328 = vpack.c.b16 %v298, %v297
        %v329 = vpack.c.b16 %v300, %v299
        %v330 = vpack.c.b16 %v302, %v301
        %v331 = vpack.c.b16 %v304, %v303
        %v332 = vpack.c.b16 %v306, %v305
        %v333 = vpack.c.b16 %v308, %v307
        %v334 = vpack.c.b16 %v310, %v309
        %v335 = vpack.c.b16 %v312, %v311
        %v336 = vpack.c.b16 %v314, %v313
        %v337 = vpack.c.b16 %v316, %v315
        %v338 = vpack.c.b16 %v318, %v317
        %v339 = vpack.c.b16 %v320, %v319
        %v340 = vpack.c.b16 %v322, %v321
        %v341 = vpack.c.b16 %v324, %v323
        %v342 = vpack.c.b16 %v326, %v325
        %v348 = vunpack.c.l.b16 %v246
        %v349 = vunpack.c.h.b16 %v246
        %v350 = vunpack.c.l.b16 %v247
        %v351 = vunpack.c.h.b16 %v247
        %v352 = vunpack.c.l.b16 %v248
        %v353 = vunpack.c.h.b16 %v248
        %v354 = vunpack.c.l.b16 %v249
        %v355 = vunpack.c.h.b16 %v249
        %v356 = vunpack.c.l.b16 %v250
        %v357 = vunpack.c.h.b16 %v250
        %v358 = vpack.c.b16 %v350, %v348
        %v359 = vpack.c.b16 %v351, %v349
        %v360 = vpack.c.b16 %v354, %v352
        %v361 = vpack.c.b16 %v355, %v353
        %v362 = vpack.c.b16 %v356, %v356
        %v363 = vpack.c.b16 %v357, %v357
        %vm368 = vcmask 293888
        %v370 = vsel %vm368, %v327, 0
        %v373 = vsel %vm368, %v328, 0
        %v376 = vsel %vm368, %v329, 0
        %v379 = vsel %vm368, %v330, 0
        %v382 = vsel %vm368, %v331, 0
        %v385 = vsel %vm368, %v332, 0
        %v388 = vsel %vm368, %v333, 0
        %v391 = vsel %vm368, %v334, 0
        %v394 = vsel %vm368, %v335, 0
        %v397 = vsel %vm368, %v336, 0
        %v400 = vsel %vm368, %v337, 0
        %v403 = vsel %vm368, %v338, 0
        %v406 = vsel %vm368, %v339, 0
        %v409 = vsel %vm368, %v340, 0
        %v412 = vsel %vm368, %v341, 0
        %v415 = vsel %vm368, %v342, 0
        %vm417 = vcmask 1041408
        %v419 = vsel %vm417, %v362, 0
        %v422 = vsel %vm417, %v363, 0
        %424 = vmatprep.subr.bf16.mxu0 %v359
        %425 = vmatpush1.bf16.msra.mxu0 %v358
        %426 = vmatprep.subr.bf16.mxu0 %v361
        %427 = vmatpush1.bf16.msra.mxu0 %v360
        %428 = vmatprep.subr.bf16.mxu0 %v422
        %429 = vmatpush1.bf16.msra.mxu0 %v419
        %430 = vmatprep.subr.bf16.mxu0 0
        %431 = vmatpush1.bf16.msra.mxu0 0
        %432 = vmatprep.subr.bf16.mxu0 0
        %433 = vmatpush1.bf16.msra.mxu0 0
        %434 = vmatprep.subr.bf16.mxu0 0
        %435 = vmatpush1.bf16.msra.mxu0 0
        %436 = vmatprep.subr.bf16.mxu0 0
        %437 = vmatpush1.bf16.msra.mxu0 0
        %438 = vmatprep.subr.bf16.mxu0 0
        %439 = vmatpush1.bf16.msra.mxu0 0
        %440 = vmatprep.subr.bf16.mxu0 0
        %441 = vmatpush1.bf16.msra.mxu0 0
        %442 = vmatprep.subr.bf16.mxu0 0
        %443 = vmatpush1.bf16.msra.mxu0 0
        %444 = vmatprep.subr.bf16.mxu0 0
        %445 = vmatpush1.bf16.msra.mxu0 0
        %446 = vmatprep.subr.bf16.mxu0 0
        %447 = vmatpush1.bf16.msra.mxu0 0
        %448 = vmatprep.subr.bf16.mxu0 0
        %449 = vmatpush1.bf16.msra.mxu0 0
        %450 = vmatprep.subr.bf16.mxu0 0
        %451 = vmatpush1.bf16.msra.mxu0 0
        %452 = vmatprep.subr.bf16.mxu0 0
        %453 = vmatpush1.bf16.msra.mxu0 0
        %454 = vmatprep.subr.bf16.mxu0 0
        %455 = vmatpush1.bf16.msra.mxu0 0
        %456 = vmatprep.mubr.bf16.mxu0 0
        %457 = vmatmul.mubr.bf16.gmra.mrb[0].mxu0 %v370
        %v458 = vpop.f32.mrb[0].mxu0
        %v459 = vadd.f32 %v256, %v458
        %v460 = vpop.f32.mrb[0].mxu0
        %v461 = vadd.f32 %v260, %v460
        %v462 = vpop.f32.mrb[0].mxu0
        %v463 = vadd.f32 %v256, %v462
        %v464 = vpop.f32.mrb[0].mxu0
        %v465 = vadd.f32 %v260, %v464
        %466 = vmatprep.mubr.bf16.mxu0 0
        %467 = vmatmul.mubr.bf16.gmra.mrb[0].mxu0 %v373
        %v468 = vpop.f32.mrb[0].mxu0
        %v469 = vadd.f32 %v256, %v468
        %v470 = vpop.f32.mrb[0].mxu0
        %v471 = vadd.f32 %v260, %v470
        %v472 = vpop.f32.mrb[0].mxu0
        %v473 = vadd.f32 %v256, %v472
        %v474 = vpop.f32.mrb[0].mxu0
        %v475 = vadd.f32 %v260, %v474
        %476 = vmatprep.mubr.bf16.mxu0 0
        %477 = vmatmul.mubr.bf16.gmra.mrb[0].mxu0 %v376
        %v478 = vpop.f32.mrb[0].mxu0
        %v479 = vadd.f32 %v256, %v478
        %v480 = vpop.f32.mrb[0].mxu0
        %v481 = vadd.f32 %v260, %v480
        %v482 = vpop.f32.mrb[0].mxu0
        %v483 = vadd.f32 %v256, %v482
        %v484 = vpop.f32.mrb[0].mxu0
        %v485 = vadd.f32 %v260, %v484
        %486 = vmatprep.mubr.bf16.mxu0 0
        %487 = vmatmul.mubr.bf16.gmra.mrb[0].mxu0 %v379
        %v488 = vpop.f32.mrb[0].mxu0
        %v489 = vadd.f32 %v256, %v488
        %v490 = vpop.f32.mrb[0].mxu0
        %v491 = vadd.f32 %v260, %v490
        %v492 = vpop.f32.mrb[0].mxu0
        %v493 = vadd.f32 %v256, %v492
        %v494 = vpop.f32.mrb[0].mxu0
        %v495 = vadd.f32 %v260, %v494
        %496 = vmatprep.mubr.bf16.mxu0 0
        %497 = vmatmul.mubr.bf16.gmra.mrb[0].mxu0 %v382
        %v498 = vpop.f32.mrb[0].mxu0
        %v499 = vadd.f32 %v256, %v498
        %v500 = vpop.f32.mrb[0].mxu0
        %v501 = vadd.f32 %v260, %v500
        %v502 = vpop.f32.mrb[0].mxu0
        %v503 = vadd.f32 %v256, %v502
        %v504 = vpop.f32.mrb[0].mxu0
        %v505 = vadd.f32 %v260, %v504
        %506 = vmatprep.mubr.bf16.mxu0 0
        %507 = vmatmul.mubr.bf16.gmra.mrb[0].mxu0 %v385
        %v508 = vpop.f32.mrb[0].mxu0
        %v509 = vadd.f32 %v256, %v508
        %v510 = vpop.f32.mrb[0].mxu0
        %v511 = vadd.f32 %v260, %v510
        %v512 = vpop.f32.mrb[0].mxu0
        %v513 = vadd.f32 %v256, %v512
        %v514 = vpop.f32.mrb[0].mxu0
        %v515 = vadd.f32 %v260, %v514
        %516 = vmatprep.mubr.bf16.mxu0 0
        %517 = vmatmul.mubr.bf16.gmra.mrb[0].mxu0 %v388
        %v518 = vpop.f32.mrb[0].mxu0
        %v519 = vadd.f32 %v256, %v518
        %v520 = vpop.f32.mrb[0].mxu0
        %v521 = vadd.f32 %v260, %v520
        %v522 = vpop.f32.mrb[0].mxu0
        %v523 = vadd.f32 %v256, %v522
        %v524 = vpop.f32.mrb[0].mxu0
        %v525 = vadd.f32 %v260, %v524
        %526 = vmatprep.mubr.bf16.mxu0 0
        %527 = vmatmul.mubr.bf16.gmra.mrb[0].mxu0 %v391
        %v528 = vpop.f32.mrb[0].mxu0
        %v529 = vadd.f32 %v256, %v528
        %v530 = vpop.f32.mrb[0].mxu0
        %v531 = vadd.f32 %v260, %v530
        %v532 = vpop.f32.mrb[0].mxu0
        %v533 = vadd.f32 %v256, %v532
        %v534 = vpop.f32.mrb[0].mxu0
        %v535 = vadd.f32 %v260, %v534
        %536 = vmatprep.mubr.bf16.mxu0 0
        %537 = vmatmul.mubr.bf16.gmra.mrb[0].mxu0 %v394
        %v538 = vpop.f32.mrb[0].mxu0
        %v539 = vadd.f32 %v256, %v538
        %v540 = vpop.f32.mrb[0].mxu0
        %v541 = vadd.f32 %v260, %v540
        %v542 = vpop.f32.mrb[0].mxu0
        %v543 = vadd.f32 %v256, %v542
        %v544 = vpop.f32.mrb[0].mxu0
        %v545 = vadd.f32 %v260, %v544
        %546 = vmatprep.mubr.bf16.mxu0 0
        %547 = vmatmul.mubr.bf16.gmra.mrb[0].mxu0 %v397
        %v548 = vpop.f32.mrb[0].mxu0
        %v549 = vadd.f32 %v256, %v548
        %v550 = vpop.f32.mrb[0].mxu0
        %v551 = vadd.f32 %v260, %v550
        %v552 = vpop.f32.mrb[0].mxu0
        %v553 = vadd.f32 %v256, %v552
        %v554 = vpop.f32.mrb[0].mxu0
        %v555 = vadd.f32 %v260, %v554
        %556 = vmatprep.mubr.bf16.mxu0 0
        %557 = vmatmul.mubr.bf16.gmra.mrb[0].mxu0 %v400
        %v558 = vpop.f32.mrb[0].mxu0
        %v559 = vadd.f32 %v256, %v558
        %v560 = vpop.f32.mrb[0].mxu0
        %v561 = vadd.f32 %v260, %v560
        %v562 = vpop.f32.mrb[0].mxu0
        %v563 = vadd.f32 %v256, %v562
        %v564 = vpop.f32.mrb[0].mxu0
        %v565 = vadd.f32 %v260, %v564
        %566 = vmatprep.mubr.bf16.mxu0 0
        %567 = vmatmul.mubr.bf16.gmra.mrb[0].mxu0 %v403
        %v568 = vpop.f32.mrb[0].mxu0
        %v569 = vadd.f32 %v256, %v568
        %v570 = vpop.f32.mrb[0].mxu0
        %v571 = vadd.f32 %v260, %v570
        %v572 = vpop.f32.mrb[0].mxu0
        %v573 = vadd.f32 %v256, %v572
        %v574 = vpop.f32.mrb[0].mxu0
        %v575 = vadd.f32 %v260, %v574
        %576 = vmatprep.mubr.bf16.mxu0 0
        %577 = vmatmul.mubr.bf16.gmra.mrb[0].mxu0 %v406
        %v578 = vpop.f32.mrb[0].mxu0
        %v579 = vadd.f32 %v256, %v578
        %v580 = vpop.f32.mrb[0].mxu0
        %v581 = vadd.f32 %v260, %v580
        %v582 = vpop.f32.mrb[0].mxu0
        %v583 = vadd.f32 %v256, %v582
        %v584 = vpop.f32.mrb[0].mxu0
        %v585 = vadd.f32 %v260, %v584
        %586 = vmatprep.mubr.bf16.mxu0 0
        %587 = vmatmul.mubr.bf16.gmra.mrb[0].mxu0 %v409
        %v588 = vpop.f32.mrb[0].mxu0
        %v589 = vadd.f32 %v256, %v588
        %v590 = vpop.f32.mrb[0].mxu0
        %v591 = vadd.f32 %v260, %v590
        %v592 = vpop.f32.mrb[0].mxu0
        %v593 = vadd.f32 %v256, %v592
        %v594 = vpop.f32.mrb[0].mxu0
        %v595 = vadd.f32 %v260, %v594
        %596 = vmatprep.mubr.bf16.mxu0 0
        %597 = vmatmul.mubr.bf16.gmra.mrb[0].mxu0 %v412
        %v598 = vpop.f32.mrb[0].mxu0
        %v599 = vadd.f32 %v256, %v598
        %v600 = vpop.f32.mrb[0].mxu0
        %v601 = vadd.f32 %v260, %v600
        %v602 = vpop.f32.mrb[0].mxu0
        %v603 = vadd.f32 %v256, %v602
        %v604 = vpop.f32.mrb[0].mxu0
        %v605 = vadd.f32 %v260, %v604
        %606 = vmatprep.mubr.bf16.mxu0 0
        %607 = vmatmul.mubr.bf16.gmra.mrb[0].mxu0 %v415
        %v608 = vpop.f32.mrb[0].mxu0
        %v609 = vadd.f32 %v256, %v608
        %v610 = vpop.f32.mrb[0].mxu0
        %v611 = vadd.f32 %v260, %v610
        %v612 = vpop.f32.mrb[0].mxu0
        %v613 = vadd.f32 %v256, %v612
        %v614 = vpop.f32.mrb[0].mxu0
        %v615 = vadd.f32 %v260, %v614
        %616 = vdwg.mxu0
        %v617 = vmax.f32 %v459, 0.0
        %v618 = vmax.f32 %v461, 0.0
        %v619 = vmax.f32 %v463, 0.0
        %v620 = vmax.f32 %v465, 0.0
        %v621 = vmax.f32 %v469, 0.0
        %v622 = vmax.f32 %v471, 0.0
        %v623 = vmax.f32 %v473, 0.0
        %v624 = vmax.f32 %v475, 0.0
        %v625 = vmax.f32 %v479, 0.0
        %v626 = vmax.f32 %v481, 0.0
        %v627 = vmax.f32 %v483, 0.0
        %v628 = vmax.f32 %v485, 0.0
        %v629 = vmax.f32 %v489, 0.0
        %v630 = vmax.f32 %v491, 0.0
        %v631 = vmax.f32 %v493, 0.0
        %v632 = vmax.f32 %v495, 0.0
        %v633 = vmax.f32 %v499, 0.0
        %v634 = vmax.f32 %v501, 0.0
        %v635 = vmax.f32 %v503, 0.0
        %v636 = vmax.f32 %v505, 0.0
        %v637 = vmax.f32 %v509, 0.0
        %v638 = vmax.f32 %v511, 0.0
        %v639 = vmax.f32 %v513, 0.0
        %v640 = vmax.f32 %v515, 0.0
        %v641 = vmax.f32 %v519, 0.0
        %v642 = vmax.f32 %v521, 0.0
        %v643 = vmax.f32 %v523, 0.0
        %v644 = vmax.f32 %v525, 0.0
        %v645 = vmax.f32 %v529, 0.0
        %v646 = vmax.f32 %v531, 0.0
        %v647 = vmax.f32 %v533, 0.0
        %v648 = vmax.f32 %v535, 0.0
        %v649 = vmax.f32 %v539, 0.0
        %v650 = vmax.f32 %v541, 0.0
        %v651 = vmax.f32 %v543, 0.0
        %v652 = vmax.f32 %v545, 0.0
        %v653 = vmax.f32 %v549, 0.0
        %v654 = vmax.f32 %v551, 0.0
        %v655 = vmax.f32 %v553, 0.0
        %v656 = vmax.f32 %v555, 0.0
        %v657 = vmax.f32 %v559, 0.0
        %v658 = vmax.f32 %v561, 0.0
        %v659 = vmax.f32 %v563, 0.0
        %v660 = vmax.f32 %v565, 0.0
        %v661 = vmax.f32 %v569, 0.0
        %v662 = vmax.f32 %v571, 0.0
        %v663 = vmax.f32 %v573, 0.0
        %v664 = vmax.f32 %v575, 0.0
        %v665 = vmax.f32 %v579, 0.0
        %v666 = vmax.f32 %v581, 0.0
        %v667 = vmax.f32 %v583, 0.0
        %v668 = vmax.f32 %v585, 0.0
        %v669 = vmax.f32 %v589, 0.0
        %v670 = vmax.f32 %v591, 0.0
        %v671 = vmax.f32 %v593, 0.0
        %v672 = vmax.f32 %v595, 0.0
        %v673 = vmax.f32 %v599, 0.0
        %v674 = vmax.f32 %v601, 0.0
        %v675 = vmax.f32 %v603, 0.0
        %v676 = vmax.f32 %v605, 0.0
        %v677 = vmax.f32 %v609, 0.0
        %v678 = vmax.f32 %v611, 0.0
        %v679 = vmax.f32 %v613, 0.0
        %v680 = vmax.f32 %v615, 0.0
        %681 = vst [vmem:[%s201] sm:$0xff] %v617
        %682 = vst [vmem:[%s201 + $0x8] sm:$0xff] %v618
        %683 = vst [vmem:[%s201 + $0x40] sm:$0xff] %v619
        %684 = vst [vmem:[%s201 + $0x48] sm:$0xff] %v620
        %685 = vst [vmem:[%s201 + $0x80] sm:$0xff] %v621
        %686 = vst [vmem:[%s201 + $0x88] sm:$0xff] %v622
        %687 = vst [vmem:[%s201 + $0xc0] sm:$0xff] %v623
        %688 = vst [vmem:[%s201 + $0xc8] sm:$0xff] %v624
        %689 = vst [vmem:[%s201 + $0x100] sm:$0xff] %v625
        %690 = vst [vmem:[%s201 + $0x108] sm:$0xff] %v626
        %691 = vst [vmem:[%s201 + $0x140] sm:$0xff] %v627
        %692 = vst [vmem:[%s201 + $0x148] sm:$0xff] %v628
        %693 = vst [vmem:[%s201 + $0x180] sm:$0xff] %v629
        %694 = vst [vmem:[%s201 + $0x188] sm:$0xff] %v630
        %695 = vst [vmem:[%s201 + $0x1c0] sm:$0xff] %v631
        %696 = vst [vmem:[%s201 + $0x1c8] sm:$0xff] %v632
        %697 = vst [vmem:[%s201 + $0x200] sm:$0xff] %v633
        %698 = vst [vmem:[%s201 + $0x208] sm:$0xff] %v634
        %699 = vst [vmem:[%s201 + $0x240] sm:$0xff] %v635
        %700 = vst [vmem:[%s201 + $0x248] sm:$0xff] %v636
        %701 = vst [vmem:[%s201 + $0x280] sm:$0xff] %v637
        %702 = vst [vmem:[%s201 + $0x288] sm:$0xff] %v638
        %703 = vst [vmem:[%s201 + $0x2c0] sm:$0xff] %v639
        %704 = vst [vmem:[%s201 + $0x2c8] sm:$0xff] %v640
        %705 = vst [vmem:[%s201 + $0x300] sm:$0xff] %v641
        %706 = vst [vmem:[%s201 + $0x308] sm:$0xff] %v642
        %707 = vst [vmem:[%s201 + $0x340] sm:$0xff] %v643
        %708 = vst [vmem:[%s201 + $0x348] sm:$0xff] %v644
        %709 = vst [vmem:[%s201 + $0x380] sm:$0xff] %v645
        %710 = vst [vmem:[%s201 + $0x388] sm:$0xff] %v646
        %711 = vst [vmem:[%s201 + $0x3c0] sm:$0xff] %v647
        %712 = vst [vmem:[%s201 + $0x3c8] sm:$0xff] %v648
        %713 = vst [vmem:[%s201 + $0x400] sm:$0xff] %v649
        %714 = vst [vmem:[%s201 + $0x408] sm:$0xff] %v650
        %715 = vst [vmem:[%s201 + $0x440] sm:$0xff] %v651
        %716 = vst [vmem:[%s201 + $0x448] sm:$0xff] %v652
        %717 = vst [vmem:[%s201 + $0x480] sm:$0xff] %v653
        %718 = vst [vmem:[%s201 + $0x488] sm:$0xff] %v654
        %719 = vst [vmem:[%s201 + $0x4c0] sm:$0xff] %v655
        %720 = vst [vmem:[%s201 + $0x4c8] sm:$0xff] %v656
        %721 = vst [vmem:[%s201 + $0x500] sm:$0xff] %v657
        %722 = vst [vmem:[%s201 + $0x508] sm:$0xff] %v658
        %723 = vst [vmem:[%s201 + $0x540] sm:$0xff] %v659
        %724 = vst [vmem:[%s201 + $0x548] sm:$0xff] %v660
        %725 = vst [vmem:[%s201 + $0x580] sm:$0xff] %v661
        %726 = vst [vmem:[%s201 + $0x588] sm:$0xff] %v662
        %727 = vst [vmem:[%s201 + $0x5c0] sm:$0xff] %v663
        %728 = vst [vmem:[%s201 + $0x5c8] sm:$0xff] %v664
        %729 = vst [vmem:[%s201 + $0x600] sm:$0xff] %v665
        %730 = vst [vmem:[%s201 + $0x608] sm:$0xff] %v666
        %731 = vst [vmem:[%s201 + $0x640] sm:$0xff] %v667
        %732 = vst [vmem:[%s201 + $0x648] sm:$0xff] %v668
        %733 = vst [vmem:[%s201 + $0x680] sm:$0xff] %v669
        %734 = vst [vmem:[%s201 + $0x688] sm:$0xff] %v670
        %735 = vst [vmem:[%s201 + $0x6c0] sm:$0xff] %v671
        %736 = vst [vmem:[%s201 + $0x6c8] sm:$0xff] %v672
        %737 = vst [vmem:[%s201 + $0x700] sm:$0xff] %v673
        %738 = vst [vmem:[%s201 + $0x708] sm:$0xff] %v674
        %739 = vst [vmem:[%s201 + $0x740] sm:$0xff] %v675
        %740 = vst [vmem:[%s201 + $0x748] sm:$0xff] %v676
        %741 = vst [vmem:[%s201 + $0x780] sm:$0xff] %v677
        %742 = vst [vmem:[%s201 + $0x788] sm:$0xff] %v678
        %743 = vst [vmem:[%s201 + $0x7c0] sm:$0xff] %v679
        %744 = vst [vmem:[%s201 + $0x7c8] sm:$0xff] %v680
        %s745 = scalar_lea.vmem %s210, 128
        %v746 = vld [vmem:[%s745] sm:$0xf]
        %v747 = vld [vmem:[%s745 + $0x4] sm:$0xf]
        %v748 = vld [vmem:[%s745 + $0x8] sm:$0xf]
        %v749 = vld [vmem:[%s745 + $0xc] sm:$0xf]
        %v750 = vld [vmem:[%s745 + $0x10] sm:$0xf]
        %v751 = vld [vmem:[%s745 + $0x14] sm:$0xf]
        %v752 = vld [vmem:[%s745 + $0x18] sm:$0xf]
        %v753 = vld [vmem:[%s745 + $0x1c] sm:$0xf]
        %v754 = vld [vmem:[%s745 + $0x20] sm:$0xf]
        %v755 = vld [vmem:[%s745 + $0x24] sm:$0xf]
        %v756 = vld [vmem:[%s745 + $0x28] sm:$0xf]
        %v757 = vld [vmem:[%s745 + $0x2c] sm:$0xf]
        %v758 = vld [vmem:[%s745 + $0x30] sm:$0xf]
        %v759 = vld [vmem:[%s745 + $0x34] sm:$0xf]
        %v760 = vld [vmem:[%s745 + $0x38] sm:$0xf]
        %v761 = vld [vmem:[%s745 + $0x3c] sm:$0xf]
        %v762 = vld [vmem:[%s745 + $0x40] sm:$0xf]
        %v763 = vld [vmem:[%s745 + $0x44] sm:$0xf]
        %v764 = vld [vmem:[%s745 + $0x48] sm:$0xf]
        %v765 = vld [vmem:[%s745 + $0x4c] sm:$0xf]
        %v766 = vld [vmem:[%s745 + $0x50] sm:$0xf]
        %v767 = vld [vmem:[%s745 + $0x54] sm:$0xf]
        %v768 = vld [vmem:[%s745 + $0x58] sm:$0xf]
        %v769 = vld [vmem:[%s745 + $0x5c] sm:$0xf]
        %v770 = vld [vmem:[%s745 + $0x60] sm:$0xf]
        %v771 = vld [vmem:[%s745 + $0x64] sm:$0xf]
        %v772 = vld [vmem:[%s745 + $0x68] sm:$0xf]
        %v773 = vld [vmem:[%s745 + $0x6c] sm:$0xf]
        %v774 = vld [vmem:[%s745 + $0x70] sm:$0xf]
        %v775 = vld [vmem:[%s745 + $0x74] sm:$0xf]
        %v776 = vld [vmem:[%s745 + $0x78] sm:$0xf]
        %v777 = vld [vmem:[%s745 + $0x7c] sm:$0xf]
        %s778 = scalar_lea.vmem %s1, 40
        %v779 = vld [vmem:[%s778] sm:$0xff]
        %v780 = vld [vmem:[%s778 + $0x8] sm:$0xff]
        %v781 = vld [vmem:[%s778 + $0x10] sm:$0xff]
        %v782 = vld [vmem:[%s778 + $0x18] sm:$0xff]
        %v783 = vld [vmem:[%s778 + $0x20] sm:$0x33]
        %v784 = vld [vmem:[#allocation2 + $0x2] sm:$0x3]
        %v786 = vlaneseq
        %v787 = vshrl.u32 %v786, 7
        %v788 = vsub.s32 0, %v787
        %v789 = vrot.slane %v784, %v788
        %v790 = vlaneseq
        %v791 = vshrl.u32 %v790, 7
        %v792 = vsub.s32 1, %v791
        %v793 = vrot.slane %v784, %v792
        %v828 = vunpack.c.l.b16 %v746
        %v829 = vunpack.c.l.b16 %v747
        %v830 = vunpack.c.l.b16 %v748
        %v831 = vunpack.c.l.b16 %v749
        %v832 = vunpack.c.l.b16 %v750
        %v833 = vunpack.c.l.b16 %v751
        %v834 = vunpack.c.l.b16 %v752
        %v835 = vunpack.c.l.b16 %v753
        %v836 = vunpack.c.l.b16 %v754
        %v837 = vunpack.c.l.b16 %v755
        %v838 = vunpack.c.l.b16 %v756
        %v839 = vunpack.c.l.b16 %v757
        %v840 = vunpack.c.l.b16 %v758
        %v841 = vunpack.c.l.b16 %v759
        %v842 = vunpack.c.l.b16 %v760
        %v843 = vunpack.c.l.b16 %v761
        %v844 = vunpack.c.l.b16 %v762
        %v845 = vunpack.c.l.b16 %v763
        %v846 = vunpack.c.l.b16 %v764
        %v847 = vunpack.c.l.b16 %v765
        %v848 = vunpack.c.l.b16 %v766
        %v849 = vunpack.c.l.b16 %v767
        %v850 = vunpack.c.l.b16 %v768
        %v851 = vunpack.c.l.b16 %v769
        %v852 = vunpack.c.l.b16 %v770
        %v853 = vunpack.c.l.b16 %v771
        %v854 = vunpack.c.l.b16 %v772
        %v855 = vunpack.c.l.b16 %v773
        %v856 = vunpack.c.l.b16 %v774
        %v857 = vunpack.c.l.b16 %v775
        %v858 = vunpack.c.l.b16 %v776
        %v859 = vunpack.c.l.b16 %v777
        %v860 = vpack.c.b16 %v829, %v828
        %v861 = vpack.c.b16 %v831, %v830
        %v862 = vpack.c.b16 %v833, %v832
        %v863 = vpack.c.b16 %v835, %v834
        %v864 = vpack.c.b16 %v837, %v836
        %v865 = vpack.c.b16 %v839, %v838
        %v866 = vpack.c.b16 %v841, %v840
        %v867 = vpack.c.b16 %v843, %v842
        %v868 = vpack.c.b16 %v845, %v844
        %v869 = vpack.c.b16 %v847, %v846
        %v870 = vpack.c.b16 %v849, %v848
        %v871 = vpack.c.b16 %v851, %v850
        %v872 = vpack.c.b16 %v853, %v852
        %v873 = vpack.c.b16 %v855, %v854
        %v874 = vpack.c.b16 %v857, %v856
        %v875 = vpack.c.b16 %v859, %v858
        %v881 = vunpack.c.l.b16 %v779
        %v882 = vunpack.c.h.b16 %v779
        %v883 = vunpack.c.l.b16 %v780
        %v884 = vunpack.c.h.b16 %v780
        %v885 = vunpack.c.l.b16 %v781
        %v886 = vunpack.c.h.b16 %v781
        %v887 = vunpack.c.l.b16 %v782
        %v888 = vunpack.c.h.b16 %v782
        %v889 = vunpack.c.l.b16 %v783
        %v890 = vunpack.c.h.b16 %v783
        %v891 = vpack.c.b16 %v883, %v881
        %v892 = vpack.c.b16 %v884, %v882
        %v893 = vpack.c.b16 %v887, %v885
        %v894 = vpack.c.b16 %v888, %v886
        %v895 = vpack.c.b16 %v889, %v889
        %v896 = vpack.c.b16 %v890, %v890
        %v902 = vsel %vm368, %v860, 0
        %v905 = vsel %vm368, %v861, 0
        %v908 = vsel %vm368, %v862, 0
        %v911 = vsel %vm368, %v863, 0
        %v914 = vsel %vm368, %v864, 0
        %v917 = vsel %vm368, %v865, 0
        %v920 = vsel %vm368, %v866, 0
        %v923 = vsel %vm368, %v867, 0
        %v926 = vsel %vm368, %v868, 0
        %v929 = vsel %vm368, %v869, 0
        %v932 = vsel %vm368, %v870, 0
        %v935 = vsel %vm368, %v871, 0
        %v938 = vsel %vm368, %v872, 0
        %v941 = vsel %vm368, %v873, 0
        %v944 = vsel %vm368, %v874, 0
        %v947 = vsel %vm368, %v875, 0
        %v950 = vsel %vm417, %v895, 0
        %v953 = vsel %vm417, %v896, 0
        %955 = vmatprep.subr.bf16.mxu0 %v892
        %956 = vmatpush1.bf16.msra.mxu0 %v891
        %957 = vmatprep.subr.bf16.mxu0 %v894
        %958 = vmatpush1.bf16.msra.mxu0 %v893
        %959 = vmatprep.subr.bf16.mxu0 %v953
        %960 = vmatpush1.bf16.msra.mxu0 %v950
        %961 = vmatprep.subr.bf16.mxu0 0
        %962 = vmatpush1.bf16.msra.mxu0 0
        %963 = vmatprep.subr.bf16.mxu0 0
        %964 = vmatpush1.bf16.msra.mxu0 0
        %965 = vmatprep.subr.bf16.mxu0 0
        %966 = vmatpush1.bf16.msra.mxu0 0
        %967 = vmatprep.subr.bf16.mxu0 0
        %968 = vmatpush1.bf16.msra.mxu0 0
        %969 = vmatprep.subr.bf16.mxu0 0
        %970 = vmatpush1.bf16.msra.mxu0 0
        %971 = vmatprep.subr.bf16.mxu0 0
        %972 = vmatpush1.bf16.msra.mxu0 0
        %973 = vmatprep.subr.bf16.mxu0 0
        %974 = vmatpush1.bf16.msra.mxu0 0
        %975 = vmatprep.subr.bf16.mxu0 0
        %976 = vmatpush1.bf16.msra.mxu0 0
        %977 = vmatprep.subr.bf16.mxu0 0
        %978 = vmatpush1.bf16.msra.mxu0 0
        %979 = vmatprep.subr.bf16.mxu0 0
        %980 = vmatpush1.bf16.msra.mxu0 0
        %981 = vmatprep.subr.bf16.mxu0 0
        %982 = vmatpush1.bf16.msra.mxu0 0
        %983 = vmatprep.subr.bf16.mxu0 0
        %984 = vmatpush1.bf16.msra.mxu0 0
        %985 = vmatprep.subr.bf16.mxu0 0
        %986 = vmatpush1.bf16.msra.mxu0 0
        %987 = vmatprep.mubr.bf16.mxu0 0
        %988 = vmatmul.mubr.bf16.gmra.mrb[0].mxu0 %v902
        %v989 = vpop.f32.mrb[0].mxu0
        %v990 = vadd.f32 %v789, %v989
        %v991 = vpop.f32.mrb[0].mxu0
        %v992 = vadd.f32 %v793, %v991
        %v993 = vpop.f32.mrb[0].mxu0
        %v994 = vadd.f32 %v789, %v993
        %v995 = vpop.f32.mrb[0].mxu0
        %v996 = vadd.f32 %v793, %v995
        %997 = vmatprep.mubr.bf16.mxu0 0
        %998 = vmatmul.mubr.bf16.gmra.mrb[0].mxu0 %v905
        %v999 = vpop.f32.mrb[0].mxu0
        %v1000 = vadd.f32 %v789, %v999
        %v1001 = vpop.f32.mrb[0].mxu0
        %v1002 = vadd.f32 %v793, %v1001
        %v1003 = vpop.f32.mrb[0].mxu0
        %v1004 = vadd.f32 %v789, %v1003
        %v1005 = vpop.f32.mrb[0].mxu0
        %v1006 = vadd.f32 %v793, %v1005
        %1007 = vmatprep.mubr.bf16.mxu0 0
        %1008 = vmatmul.mubr.bf16.gmra.mrb[0].mxu0 %v908
        %v1009 = vpop.f32.mrb[0].mxu0
        %v1010 = vadd.f32 %v789, %v1009
        %v1011 = vpop.f32.mrb[0].mxu0
        %v1012 = vadd.f32 %v793, %v1011
        %v1013 = vpop.f32.mrb[0].mxu0
        %v1014 = vadd.f32 %v789, %v1013
        %v1015 = vpop.f32.mrb[0].mxu0
        %v1016 = vadd.f32 %v793, %v1015
        %1017 = vmatprep.mubr.bf16.mxu0 0
        %1018 = vmatmul.mubr.bf16.gmra.mrb[0].mxu0 %v911
        %v1019 = vpop.f32.mrb[0].mxu0
        %v1020 = vadd.f32 %v789, %v1019
        %v1021 = vpop.f32.mrb[0].mxu0
        %v1022 = vadd.f32 %v793, %v1021
        %v1023 = vpop.f32.mrb[0].mxu0
        %v1024 = vadd.f32 %v789, %v1023
        %v1025 = vpop.f32.mrb[0].mxu0
        %v1026 = vadd.f32 %v793, %v1025
        %1027 = vmatprep.mubr.bf16.mxu0 0
        %1028 = vmatmul.mubr.bf16.gmra.mrb[0].mxu0 %v914
        %v1029 = vpop.f32.mrb[0].mxu0
        %v1030 = vadd.f32 %v789, %v1029
        %v1031 = vpop.f32.mrb[0].mxu0
        %v1032 = vadd.f32 %v793, %v1031
        %v1033 = vpop.f32.mrb[0].mxu0
        %v1034 = vadd.f32 %v789, %v1033
        %v1035 = vpop.f32.mrb[0].mxu0
        %v1036 = vadd.f32 %v793, %v1035
        %1037 = vmatprep.mubr.bf16.mxu0 0
        %1038 = vmatmul.mubr.bf16.gmra.mrb[0].mxu0 %v917
        %v1039 = vpop.f32.mrb[0].mxu0
        %v1040 = vadd.f32 %v789, %v1039
        %v1041 = vpop.f32.mrb[0].mxu0
        %v1042 = vadd.f32 %v793, %v1041
        %v1043 = vpop.f32.mrb[0].mxu0
        %v1044 = vadd.f32 %v789, %v1043
        %v1045 = vpop.f32.mrb[0].mxu0
        %v1046 = vadd.f32 %v793, %v1045
        %1047 = vmatprep.mubr.bf16.mxu0 0
        %1048 = vmatmul.mubr.bf16.gmra.mrb[0].mxu0 %v920
        %v1049 = vpop.f32.mrb[0].mxu0
        %v1050 = vadd.f32 %v789, %v1049
        %v1051 = vpop.f32.mrb[0].mxu0
        %v1052 = vadd.f32 %v793, %v1051
        %v1053 = vpop.f32.mrb[0].mxu0
        %v1054 = vadd.f32 %v789, %v1053
        %v1055 = vpop.f32.mrb[0].mxu0
        %v1056 = vadd.f32 %v793, %v1055
        %1057 = vmatprep.mubr.bf16.mxu0 0
        %1058 = vmatmul.mubr.bf16.gmra.mrb[0].mxu0 %v923
        %v1059 = vpop.f32.mrb[0].mxu0
        %v1060 = vadd.f32 %v789, %v1059
        %v1061 = vpop.f32.mrb[0].mxu0
        %v1062 = vadd.f32 %v793, %v1061
        %v1063 = vpop.f32.mrb[0].mxu0
        %v1064 = vadd.f32 %v789, %v1063
        %v1065 = vpop.f32.mrb[0].mxu0
        %v1066 = vadd.f32 %v793, %v1065
        %1067 = vmatprep.mubr.bf16.mxu0 0
        %1068 = vmatmul.mubr.bf16.gmra.mrb[0].mxu0 %v926
        %v1069 = vpop.f32.mrb[0].mxu0
        %v1070 = vadd.f32 %v789, %v1069
        %v1071 = vpop.f32.mrb[0].mxu0
        %v1072 = vadd.f32 %v793, %v1071
        %v1073 = vpop.f32.mrb[0].mxu0
        %v1074 = vadd.f32 %v789, %v1073
        %v1075 = vpop.f32.mrb[0].mxu0
        %v1076 = vadd.f32 %v793, %v1075
        %1077 = vmatprep.mubr.bf16.mxu0 0
        %1078 = vmatmul.mubr.bf16.gmra.mrb[0].mxu0 %v929
        %v1079 = vpop.f32.mrb[0].mxu0
        %v1080 = vadd.f32 %v789, %v1079
        %v1081 = vpop.f32.mrb[0].mxu0
        %v1082 = vadd.f32 %v793, %v1081
        %v1083 = vpop.f32.mrb[0].mxu0
        %v1084 = vadd.f32 %v789, %v1083
        %v1085 = vpop.f32.mrb[0].mxu0
        %v1086 = vadd.f32 %v793, %v1085
        %1087 = vmatprep.mubr.bf16.mxu0 0
        %1088 = vmatmul.mubr.bf16.gmra.mrb[0].mxu0 %v932
        %v1089 = vpop.f32.mrb[0].mxu0
        %v1090 = vadd.f32 %v789, %v1089
        %v1091 = vpop.f32.mrb[0].mxu0
        %v1092 = vadd.f32 %v793, %v1091
        %v1093 = vpop.f32.mrb[0].mxu0
        %v1094 = vadd.f32 %v789, %v1093
        %v1095 = vpop.f32.mrb[0].mxu0
        %v1096 = vadd.f32 %v793, %v1095
        %1097 = vmatprep.mubr.bf16.mxu0 0
        %1098 = vmatmul.mubr.bf16.gmra.mrb[0].mxu0 %v935
        %v1099 = vpop.f32.mrb[0].mxu0
        %v1100 = vadd.f32 %v789, %v1099
        %v1101 = vpop.f32.mrb[0].mxu0
        %v1102 = vadd.f32 %v793, %v1101
        %v1103 = vpop.f32.mrb[0].mxu0
        %v1104 = vadd.f32 %v789, %v1103
        %v1105 = vpop.f32.mrb[0].mxu0
        %v1106 = vadd.f32 %v793, %v1105
        %1107 = vmatprep.mubr.bf16.mxu0 0
        %1108 = vmatmul.mubr.bf16.gmra.mrb[0].mxu0 %v938
        %v1109 = vpop.f32.mrb[0].mxu0
        %v1110 = vadd.f32 %v789, %v1109
        %v1111 = vpop.f32.mrb[0].mxu0
        %v1112 = vadd.f32 %v793, %v1111
        %v1113 = vpop.f32.mrb[0].mxu0
        %v1114 = vadd.f32 %v789, %v1113
        %v1115 = vpop.f32.mrb[0].mxu0
        %v1116 = vadd.f32 %v793, %v1115
        %1117 = vmatprep.mubr.bf16.mxu0 0
        %1118 = vmatmul.mubr.bf16.gmra.mrb[0].mxu0 %v941
        %v1119 = vpop.f32.mrb[0].mxu0
        %v1120 = vadd.f32 %v789, %v1119
        %v1121 = vpop.f32.mrb[0].mxu0
        %v1122 = vadd.f32 %v793, %v1121
        %v1123 = vpop.f32.mrb[0].mxu0
        %v1124 = vadd.f32 %v789, %v1123
        %v1125 = vpop.f32.mrb[0].mxu0
        %v1126 = vadd.f32 %v793, %v1125
        %1127 = vmatprep.mubr.bf16.mxu0 0
        %1128 = vmatmul.mubr.bf16.gmra.mrb[0].mxu0 %v944
        %v1129 = vpop.f32.mrb[0].mxu0
        %v1130 = vadd.f32 %v789, %v1129
        %v1131 = vpop.f32.mrb[0].mxu0
        %v1132 = vadd.f32 %v793, %v1131
        %v1133 = vpop.f32.mrb[0].mxu0
        %v1134 = vadd.f32 %v789, %v1133
        %v1135 = vpop.f32.mrb[0].mxu0
        %v1136 = vadd.f32 %v793, %v1135
        %1137 = vmatprep.mubr.bf16.mxu0 0
        %1138 = vmatmul.mubr.bf16.gmra.mrb[0].mxu0 %v947
        %v1139 = vpop.f32.mrb[0].mxu0
        %v1140 = vadd.f32 %v789, %v1139
        %v1141 = vpop.f32.mrb[0].mxu0
        %v1142 = vadd.f32 %v793, %v1141
        %v1143 = vpop.f32.mrb[0].mxu0
        %v1144 = vadd.f32 %v789, %v1143
        %v1145 = vpop.f32.mrb[0].mxu0
        %v1146 = vadd.f32 %v793, %v1145
        %1147 = vdwg.mxu0
        %v1148 = vmax.f32 %v990, 0.0
        %v1149 = vmax.f32 %v992, 0.0
        %v1150 = vmax.f32 %v994, 0.0
        %v1151 = vmax.f32 %v996, 0.0
        %v1152 = vmax.f32 %v1000, 0.0
        %v1153 = vmax.f32 %v1002, 0.0
        %v1154 = vmax.f32 %v1004, 0.0
        %v1155 = vmax.f32 %v1006, 0.0
        %v1156 = vmax.f32 %v1010, 0.0
        %v1157 = vmax.f32 %v1012, 0.0
        %v1158 = vmax.f32 %v1014, 0.0
        %v1159 = vmax.f32 %v1016, 0.0
        %v1160 = vmax.f32 %v1020, 0.0
        %v1161 = vmax.f32 %v1022, 0.0
        %v1162 = vmax.f32 %v1024, 0.0
        %v1163 = vmax.f32 %v1026, 0.0
        %v1164 = vmax.f32 %v1030, 0.0
        %v1165 = vmax.f32 %v1032, 0.0
        %v1166 = vmax.f32 %v1034, 0.0
        %v1167 = vmax.f32 %v1036, 0.0
        %v1168 = vmax.f32 %v1040, 0.0
        %v1169 = vmax.f32 %v1042, 0.0
        %v1170 = vmax.f32 %v1044, 0.0
        %v1171 = vmax.f32 %v1046, 0.0
        %v1172 = vmax.f32 %v1050, 0.0
        %v1173 = vmax.f32 %v1052, 0.0
        %v1174 = vmax.f32 %v1054, 0.0
        %v1175 = vmax.f32 %v1056, 0.0
        %v1176 = vmax.f32 %v1060, 0.0
        %v1177 = vmax.f32 %v1062, 0.0
        %v1178 = vmax.f32 %v1064, 0.0
        %v1179 = vmax.f32 %v1066, 0.0
        %v1180 = vmax.f32 %v1070, 0.0
        %v1181 = vmax.f32 %v1072, 0.0
        %v1182 = vmax.f32 %v1074, 0.0
        %v1183 = vmax.f32 %v1076, 0.0
        %v1184 = vmax.f32 %v1080, 0.0
        %v1185 = vmax.f32 %v1082, 0.0
        %v1186 = vmax.f32 %v1084, 0.0
        %v1187 = vmax.f32 %v1086, 0.0
        %v1188 = vmax.f32 %v1090, 0.0
        %v1189 = vmax.f32 %v1092, 0.0
        %v1190 = vmax.f32 %v1094, 0.0
        %v1191 = vmax.f32 %v1096, 0.0
        %v1192 = vmax.f32 %v1100, 0.0
        %v1193 = vmax.f32 %v1102, 0.0
        %v1194 = vmax.f32 %v1104, 0.0
        %v1195 = vmax.f32 %v1106, 0.0
        %v1196 = vmax.f32 %v1110, 0.0
        %v1197 = vmax.f32 %v1112, 0.0
        %v1198 = vmax.f32 %v1114, 0.0
        %v1199 = vmax.f32 %v1116, 0.0
        %v1200 = vmax.f32 %v1120, 0.0
        %v1201 = vmax.f32 %v1122, 0.0
        %v1202 = vmax.f32 %v1124, 0.0
        %v1203 = vmax.f32 %v1126, 0.0
        %v1204 = vmax.f32 %v1130, 0.0
        %v1205 = vmax.f32 %v1132, 0.0
        %v1206 = vmax.f32 %v1134, 0.0
        %v1207 = vmax.f32 %v1136, 0.0
        %v1208 = vmax.f32 %v1140, 0.0
        %v1209 = vmax.f32 %v1142, 0.0
        %v1210 = vmax.f32 %v1144, 0.0
        %v1211 = vmax.f32 %v1146, 0.0
        %1212 = vst [vmem:[%s201 + $0x10] sm:$0xff] %v1148
        %1213 = vst [vmem:[%s201 + $0x18] sm:$0xff] %v1149
        %1214 = vst [vmem:[%s201 + $0x50] sm:$0xff] %v1150
        %1215 = vst [vmem:[%s201 + $0x58] sm:$0xff] %v1151
        %1216 = vst [vmem:[%s201 + $0x90] sm:$0xff] %v1152
        %1217 = vst [vmem:[%s201 + $0x98] sm:$0xff] %v1153
        %1218 = vst [vmem:[%s201 + $0xd0] sm:$0xff] %v1154
        %1219 = vst [vmem:[%s201 + $0xd8] sm:$0xff] %v1155
        %1220 = vst [vmem:[%s201 + $0x110] sm:$0xff] %v1156
        %1221 = vst [vmem:[%s201 + $0x118] sm:$0xff] %v1157
        %1222 = vst [vmem:[%s201 + $0x150] sm:$0xff] %v1158
        %1223 = vst [vmem:[%s201 + $0x158] sm:$0xff] %v1159
        %1224 = vst [vmem:[%s201 + $0x190] sm:$0xff] %v1160
        %1225 = vst [vmem:[%s201 + $0x198] sm:$0xff] %v1161
        %1226 = vst [vmem:[%s201 + $0x1d0] sm:$0xff] %v1162
        %1227 = vst [vmem:[%s201 + $0x1d8] sm:$0xff] %v1163
        %1228 = vst [vmem:[%s201 + $0x210] sm:$0xff] %v1164
        %1229 = vst [vmem:[%s201 + $0x218] sm:$0xff] %v1165
        %1230 = vst [vmem:[%s201 + $0x250] sm:$0xff] %v1166
        %1231 = vst [vmem:[%s201 + $0x258] sm:$0xff] %v1167
        %1232 = vst [vmem:[%s201 + $0x290] sm:$0xff] %v1168
        %1233 = vst [vmem:[%s201 + $0x298] sm:$0xff] %v1169
        %1234 = vst [vmem:[%s201 + $0x2d0] sm:$0xff] %v1170
        %1235 = vst [vmem:[%s201 + $0x2d8] sm:$0xff] %v1171
        %1236 = vst [vmem:[%s201 + $0x310] sm:$0xff] %v1172
        %1237 = vst [vmem:[%s201 + $0x318] sm:$0xff] %v1173
        %1238 = vst [vmem:[%s201 + $0x350] sm:$0xff] %v1174
        %1239 = vst [vmem:[%s201 + $0x358] sm:$0xff] %v1175
        %1240 = vst [vmem:[%s201 + $0x390] sm:$0xff] %v1176
        %1241 = vst [vmem:[%s201 + $0x398] sm:$0xff] %v1177
        %1242 = vst [vmem:[%s201 + $0x3d0] sm:$0xff] %v1178
        %1243 = vst [vmem:[%s201 + $0x3d8] sm:$0xff] %v1179
        %1244 = vst [vmem:[%s201 + $0x410] sm:$0xff] %v1180
        %1245 = vst [vmem:[%s201 + $0x418] sm:$0xff] %v1181
        %1246 = vst [vmem:[%s201 + $0x450] sm:$0xff] %v1182
        %1247 = vst [vmem:[%s201 + $0x458] sm:$0xff] %v1183
        %1248 = vst [vmem:[%s201 + $0x490] sm:$0xff] %v1184
        %1249 = vst [vmem:[%s201 + $0x498] sm:$0xff] %v1185
        %1250 = vst [vmem:[%s201 + $0x4d0] sm:$0xff] %v1186
        %1251 = vst [vmem:[%s201 + $0x4d8] sm:$0xff] %v1187
        %1252 = vst [vmem:[%s201 + $0x510] sm:$0xff] %v1188
        %1253 = vst [vmem:[%s201 + $0x518] sm:$0xff] %v1189
        %1254 = vst [vmem:[%s201 + $0x550] sm:$0xff] %v1190
        %1255 = vst [vmem:[%s201 + $0x558] sm:$0xff] %v1191
        %1256 = vst [vmem:[%s201 + $0x590] sm:$0xff] %v1192
        %1257 = vst [vmem:[%s201 + $0x598] sm:$0xff] %v1193
        %1258 = vst [vmem:[%s201 + $0x5d0] sm:$0xff] %v1194
        %1259 = vst [vmem:[%s201 + $0x5d8] sm:$0xff] %v1195
        %1260 = vst [vmem:[%s201 + $0x610] sm:$0xff] %v1196
        %1261 = vst [vmem:[%s201 + $0x618] sm:$0xff] %v1197
        %1262 = vst [vmem:[%s201 + $0x650] sm:$0xff] %v1198
        %1263 = vst [vmem:[%s201 + $0x658] sm:$0xff] %v1199
        %1264 = vst [vmem:[%s201 + $0x690] sm:$0xff] %v1200
        %1265 = vst [vmem:[%s201 + $0x698] sm:$0xff] %v1201
        %1266 = vst [vmem:[%s201 + $0x6d0] sm:$0xff] %v1202
        %1267 = vst [vmem:[%s201 + $0x6d8] sm:$0xff] %v1203
        %1268 = vst [vmem:[%s201 + $0x710] sm:$0xff] %v1204
        %1269 = vst [vmem:[%s201 + $0x718] sm:$0xff] %v1205
        %1270 = vst [vmem:[%s201 + $0x750] sm:$0xff] %v1206
        %1271 = vst [vmem:[%s201 + $0x758] sm:$0xff] %v1207
        %1272 = vst [vmem:[%s201 + $0x790] sm:$0xff] %v1208
        %1273 = vst [vmem:[%s201 + $0x798] sm:$0xff] %v1209
        %1274 = vst [vmem:[%s201 + $0x7d0] sm:$0xff] %v1210
        %1275 = vst [vmem:[%s201 + $0x7d8] sm:$0xff] %v1211
        %s1276 = scalar_lea.vmem %s210, 256
        %v1277 = vld [vmem:[%s1276] sm:$0xf]
        %v1278 = vld [vmem:[%s1276 + $0x4] sm:$0xf]
        %v1279 = vld [vmem:[%s1276 + $0x8] sm:$0xf]
        %v1280 = vld [vmem:[%s1276 + $0xc] sm:$0xf]
        %v1281 = vld [vmem:[%s1276 + $0x10] sm:$0xf]
        %v1282 = vld [vmem:[%s1276 + $0x14] sm:$0xf]
        %v1283 = vld [vmem:[%s1276 + $0x18] sm:$0xf]
        %v1284 = vld [vmem:[%s1276 + $0x1c] sm:$0xf]
        %v1285 = vld [vmem:[%s1276 + $0x20] sm:$0xf]
        %v1286 = vld [vmem:[%s1276 + $0x24] sm:$0xf]
        %v1287 = vld [vmem:[%s1276 + $0x28] sm:$0xf]
        %v1288 = vld [vmem:[%s1276 + $0x2c] sm:$0xf]
        %v1289 = vld [vmem:[%s1276 + $0x30] sm:$0xf]
        %v1290 = vld [vmem:[%s1276 + $0x34] sm:$0xf]
        %v1291 = vld [vmem:[%s1276 + $0x38] sm:$0xf]
        %v1292 = vld [vmem:[%s1276 + $0x3c] sm:$0xf]
        %v1293 = vld [vmem:[%s1276 + $0x40] sm:$0xf]
        %v1294 = vld [vmem:[%s1276 + $0x44] sm:$0xf]
        %v1295 = vld [vmem:[%s1276 + $0x48] sm:$0xf]
        %v1296 = vld [vmem:[%s1276 + $0x4c] sm:$0xf]
        %v1297 = vld [vmem:[%s1276 + $0x50] sm:$0xf]
        %v1298 = vld [vmem:[%s1276 + $0x54] sm:$0xf]
        %v1299 = vld [vmem:[%s1276 + $0x58] sm:$0xf]
        %v1300 = vld [vmem:[%s1276 + $0x5c] sm:$0xf]
        %v1301 = vld [vmem:[%s1276 + $0x60] sm:$0xf]
        %v1302 = vld [vmem:[%s1276 + $0x64] sm:$0xf]
        %v1303 = vld [vmem:[%s1276 + $0x68] sm:$0xf]
        %v1304 = vld [vmem:[%s1276 + $0x6c] sm:$0xf]
        %v1305 = vld [vmem:[%s1276 + $0x70] sm:$0xf]
        %v1306 = vld [vmem:[%s1276 + $0x74] sm:$0xf]
        %v1307 = vld [vmem:[%s1276 + $0x78] sm:$0xf]
        %v1308 = vld [vmem:[%s1276 + $0x7c] sm:$0xf]
        %s1309 = scalar_lea.vmem %s1, 80
        %v1310 = vld [vmem:[%s1309] sm:$0xff]
        %v1311 = vld [vmem:[%s1309 + $0x8] sm:$0xff]
        %v1312 = vld [vmem:[%s1309 + $0x10] sm:$0xff]
        %v1313 = vld [vmem:[%s1309 + $0x18] sm:$0xff]
        %v1314 = vld [vmem:[%s1309 + $0x20] sm:$0x33]
        %v1315 = vld [vmem:[#allocation2 + $0x4] sm:$0x3]
        %v1317 = vlaneseq
        %v1318 = vshrl.u32 %v1317, 7
        %v1319 = vsub.s32 0, %v1318
        %v1320 = vrot.slane %v1315, %v1319
        %v1321 = vlaneseq
        %v1322 = vshrl.u32 %v1321, 7
        %v1323 = vsub.s32 1, %v1322
        %v1324 = vrot.slane %v1315, %v1323
        %v1359 = vunpack.c.l.b16 %v1277
        %v1360 = vunpack.c.l.b16 %v1278
        %v1361 = vunpack.c.l.b16 %v1279
        %v1362 = vunpack.c.l.b16 %v1280
        %v1363 = vunpack.c.l.b16 %v1281
        %v1364 = vunpack.c.l.b16 %v1282
        %v1365 = vunpack.c.l.b16 %v1283
        %v1366 = vunpack.c.l.b16 %v1284
        %v1367 = vunpack.c.l.b16 %v1285
        %v1368 = vunpack.c.l.b16 %v1286
        %v1369 = vunpack.c.l.b16 %v1287
        %v1370 = vunpack.c.l.b16 %v1288
        %v1371 = vunpack.c.l.b16 %v1289
        %v1372 = vunpack.c.l.b16 %v1290
        %v1373 = vunpack.c.l.b16 %v1291
        %v1374 = vunpack.c.l.b16 %v1292
        %v1375 = vunpack.c.l.b16 %v1293
        %v1376 = vunpack.c.l.b16 %v1294
        %v1377 = vunpack.c.l.b16 %v1295
        %v1378 = vunpack.c.l.b16 %v1296
        %v1379 = vunpack.c.l.b16 %v1297
        %v1380 = vunpack.c.l.b16 %v1298
        %v1381 = vunpack.c.l.b16 %v1299
        %v1382 = vunpack.c.l.b16 %v1300
        %v1383 = vunpack.c.l.b16 %v1301
        %v1384 = vunpack.c.l.b16 %v1302
        %v1385 = vunpack.c.l.b16 %v1303
        %v1386 = vunpack.c.l.b16 %v1304
        %v1387 = vunpack.c.l.b16 %v1305
        %v1388 = vunpack.c.l.b16 %v1306
        %v1389 = vunpack.c.l.b16 %v1307
        %v1390 = vunpack.c.l.b16 %v1308
        %v1391 = vpack.c.b16 %v1360, %v1359
        %v1392 = vpack.c.b16 %v1362, %v1361
        %v1393 = vpack.c.b16 %v1364, %v1363
        %v1394 = vpack.c.b16 %v1366, %v1365
        %v1395 = vpack.c.b16 %v1368, %v1367
        %v1396 = vpack.c.b16 %v1370, %v1369
        %v1397 = vpack.c.b16 %v1372, %v1371
        %v1398 = vpack.c.b16 %v1374, %v1373
        %v1399 = vpack.c.b16 %v1376, %v1375
        %v1400 = vpack.c.b16 %v1378, %v1377
        %v1401 = vpack.c.b16 %v1380, %v1379
        %v1402 = vpack.c.b16 %v1382, %v1381
        %v1403 = vpack.c.b16 %v1384, %v1383
        %v1404 = vpack.c.b16 %v1386, %v1385
        %v1405 = vpack.c.b16 %v1388, %v1387
        %v1406 = vpack.c.b16 %v1390, %v1389
        %v1412 = vunpack.c.l.b16 %v1310
        %v1413 = vunpack.c.h.b16 %v1310
        %v1414 = vunpack.c.l.b16 %v1311
        %v1415 = vunpack.c.h.b16 %v1311
        %v1416 = vunpack.c.l.b16 %v1312
        %v1417 = vunpack.c.h.b16 %v1312
        %v1418 = vunpack.c.l.b16 %v1313
        %v1419 = vunpack.c.h.b16 %v1313
        %v1420 = vunpack.c.l.b16 %v1314
        %v1421 = vunpack.c.h.b16 %v1314
        %v1422 = vpack.c.b16 %v1414, %v1412
        %v1423 = vpack.c.b16 %v1415, %v1413
        %v1424 = vpack.c.b16 %v1418, %v1416
        %v1425 = vpack.c.b16 %v1419, %v1417
        %v1426 = vpack.c.b16 %v1420, %v1420
        %v1427 = vpack.c.b16 %v1421, %v1421
        %v1433 = vsel %vm368, %v1391, 0
        %v1436 = vsel %vm368, %v1392, 0
        %v1439 = vsel %vm368, %v1393, 0
        %v1442 = vsel %vm368, %v1394, 0
        %v1445 = vsel %vm368, %v1395, 0
        %v1448 = vsel %vm368, %v1396, 0
        %v1451 = vsel %vm368, %v1397, 0
        %v1454 = vsel %vm368, %v1398, 0
        %v1457 = vsel %vm368, %v1399, 0
        %v1460 = vsel %vm368, %v1400, 0
        %v1463 = vsel %vm368, %v1401, 0
        %v1466 = vsel %vm368, %v1402, 0
        %v1469 = vsel %vm368, %v1403, 0
        %v1472 = vsel %vm368, %v1404, 0
        %v1475 = vsel %vm368, %v1405, 0
        %v1478 = vsel %vm368, %v1406, 0
        %v1481 = vsel %vm417, %v1426, 0
        %v1484 = vsel %vm417, %v1427, 0
        %1486 = vmatprep.subr.bf16.mxu0 %v1423
        %1487 = vmatpush1.bf16.msra.mxu0 %v1422
        %1488 = vmatprep.subr.bf16.mxu0 %v1425
        %1489 = vmatpush1.bf16.msra.mxu0 %v1424
        %1490 = vmatprep.subr.bf16.mxu0 %v1484
        %1491 = vmatpush1.bf16.msra.mxu0 %v1481
        %1492 = vmatprep.subr.bf16.mxu0 0
        %1493 = vmatpush1.bf16.msra.mxu0 0
        %1494 = vmatprep.subr.bf16.mxu0 0
        %1495 = vmatpush1.bf16.msra.mxu0 0
        %1496 = vmatprep.subr.bf16.mxu0 0
        %1497 = vmatpush1.bf16.msra.mxu0 0
        %1498 = vmatprep.subr.bf16.mxu0 0
        %1499 = vmatpush1.bf16.msra.mxu0 0
        %1500 = vmatprep.subr.bf16.mxu0 0
        %1501 = vmatpush1.bf16.msra.mxu0 0
        %1502 = vmatprep.subr.bf16.mxu0 0
        %1503 = vmatpush1.bf16.msra.mxu0 0
        %1504 = vmatprep.subr.bf16.mxu0 0
        %1505 = vmatpush1.bf16.msra.mxu0 0
        %1506 = vmatprep.subr.bf16.mxu0 0
        %1507 = vmatpush1.bf16.msra.mxu0 0
        %1508 = vmatprep.subr.bf16.mxu0 0
        %1509 = vmatpush1.bf16.msra.mxu0 0
        %1510 = vmatprep.subr.bf16.mxu0 0
        %1511 = vmatpush1.bf16.msra.mxu0 0
        %1512 = vmatprep.subr.bf16.mxu0 0
        %1513 = vmatpush1.bf16.msra.mxu0 0
        %1514 = vmatprep.subr.bf16.mxu0 0
        %1515 = vmatpush1.bf16.msra.mxu0 0
        %1516 = vmatprep.subr.bf16.mxu0 0
        %1517 = vmatpush1.bf16.msra.mxu0 0
        %1518 = vmatprep.mubr.bf16.mxu0 0
        %1519 = vmatmul.mubr.bf16.gmra.mrb[0].mxu0 %v1433
        %v1520 = vpop.f32.mrb[0].mxu0
        %v1521 = vadd.f32 %v1320, %v1520
        %v1522 = vpop.f32.mrb[0].mxu0
        %v1523 = vadd.f32 %v1324, %v1522
        %v1524 = vpop.f32.mrb[0].mxu0
        %v1525 = vadd.f32 %v1320, %v1524
        %v1526 = vpop.f32.mrb[0].mxu0
        %v1527 = vadd.f32 %v1324, %v1526
        %1528 = vmatprep.mubr.bf16.mxu0 0
        %1529 = vmatmul.mubr.bf16.gmra.mrb[0].mxu0 %v1436
        %v1530 = vpop.f32.mrb[0].mxu0
        %v1531 = vadd.f32 %v1320, %v1530
        %v1532 = vpop.f32.mrb[0].mxu0
        %v1533 = vadd.f32 %v1324, %v1532
        %v1534 = vpop.f32.mrb[0].mxu0
        %v1535 = vadd.f32 %v1320, %v1534
        %v1536 = vpop.f32.mrb[0].mxu0
        %v1537 = vadd.f32 %v1324, %v1536
        %1538 = vmatprep.mubr.bf16.mxu0 0
        %1539 = vmatmul.mubr.bf16.gmra.mrb[0].mxu0 %v1439
        %v1540 = vpop.f32.mrb[0].mxu0
        %v1541 = vadd.f32 %v1320, %v1540
        %v1542 = vpop.f32.mrb[0].mxu0
        %v1543 = vadd.f32 %v1324, %v1542
        %v1544 = vpop.f32.mrb[0].mxu0
        %v1545 = vadd.f32 %v1320, %v1544
        %v1546 = vpop.f32.mrb[0].mxu0
        %v1547 = vadd.f32 %v1324, %v1546
        %1548 = vmatprep.mubr.bf16.mxu0 0
        %1549 = vmatmul.mubr.bf16.gmra.mrb[0].mxu0 %v1442
        %v1550 = vpop.f32.mrb[0].mxu0
        %v1551 = vadd.f32 %v1320, %v1550
        %v1552 = vpop.f32.mrb[0].mxu0
        %v1553 = vadd.f32 %v1324, %v1552
        %v1554 = vpop.f32.mrb[0].mxu0
        %v1555 = vadd.f32 %v1320, %v1554
        %v1556 = vpop.f32.mrb[0].mxu0
        %v1557 = vadd.f32 %v1324, %v1556
        %1558 = vmatprep.mubr.bf16.mxu0 0
        %1559 = vmatmul.mubr.bf16.gmra.mrb[0].mxu0 %v1445
        %v1560 = vpop.f32.mrb[0].mxu0
        %v1561 = vadd.f32 %v1320, %v1560
        %v1562 = vpop.f32.mrb[0].mxu0
        %v1563 = vadd.f32 %v1324, %v1562
        %v1564 = vpop.f32.mrb[0].mxu0
        %v1565 = vadd.f32 %v1320, %v1564
        %v1566 = vpop.f32.mrb[0].mxu0
        %v1567 = vadd.f32 %v1324, %v1566
        %1568 = vmatprep.mubr.bf16.mxu0 0
        %1569 = vmatmul.mubr.bf16.gmra.mrb[0].mxu0 %v1448
        %v1570 = vpop.f32.mrb[0].mxu0
        %v1571 = vadd.f32 %v1320, %v1570
        %v1572 = vpop.f32.mrb[0].mxu0
        %v1573 = vadd.f32 %v1324, %v1572
        %v1574 = vpop.f32.mrb[0].mxu0
        %v1575 = vadd.f32 %v1320, %v1574
        %v1576 = vpop.f32.mrb[0].mxu0
        %v1577 = vadd.f32 %v1324, %v1576
        %1578 = vmatprep.mubr.bf16.mxu0 0
        %1579 = vmatmul.mubr.bf16.gmra.mrb[0].mxu0 %v1451
        %v1580 = vpop.f32.mrb[0].mxu0
        %v1581 = vadd.f32 %v1320, %v1580
        %v1582 = vpop.f32.mrb[0].mxu0
        %v1583 = vadd.f32 %v1324, %v1582
        %v1584 = vpop.f32.mrb[0].mxu0
        %v1585 = vadd.f32 %v1320, %v1584
        %v1586 = vpop.f32.mrb[0].mxu0
        %v1587 = vadd.f32 %v1324, %v1586
        %1588 = vmatprep.mubr.bf16.mxu0 0
        %1589 = vmatmul.mubr.bf16.gmra.mrb[0].mxu0 %v1454
        %v1590 = vpop.f32.mrb[0].mxu0
        %v1591 = vadd.f32 %v1320, %v1590
        %v1592 = vpop.f32.mrb[0].mxu0
        %v1593 = vadd.f32 %v1324, %v1592
        %v1594 = vpop.f32.mrb[0].mxu0
        %v1595 = vadd.f32 %v1320, %v1594
        %v1596 = vpop.f32.mrb[0].mxu0
        %v1597 = vadd.f32 %v1324, %v1596
        %1598 = vmatprep.mubr.bf16.mxu0 0
        %1599 = vmatmul.mubr.bf16.gmra.mrb[0].mxu0 %v1457
        %v1600 = vpop.f32.mrb[0].mxu0
        %v1601 = vadd.f32 %v1320, %v1600
        %v1602 = vpop.f32.mrb[0].mxu0
        %v1603 = vadd.f32 %v1324, %v1602
        %v1604 = vpop.f32.mrb[0].mxu0
        %v1605 = vadd.f32 %v1320, %v1604
        %v1606 = vpop.f32.mrb[0].mxu0
        %v1607 = vadd.f32 %v1324, %v1606
        %1608 = vmatprep.mubr.bf16.mxu0 0
        %1609 = vmatmul.mubr.bf16.gmra.mrb[0].mxu0 %v1460
        %v1610 = vpop.f32.mrb[0].mxu0
        %v1611 = vadd.f32 %v1320, %v1610
        %v1612 = vpop.f32.mrb[0].mxu0
        %v1613 = vadd.f32 %v1324, %v1612
        %v1614 = vpop.f32.mrb[0].mxu0
        %v1615 = vadd.f32 %v1320, %v1614
        %v1616 = vpop.f32.mrb[0].mxu0
        %v1617 = vadd.f32 %v1324, %v1616
        %1618 = vmatprep.mubr.bf16.mxu0 0
        %1619 = vmatmul.mubr.bf16.gmra.mrb[0].mxu0 %v1463
        %v1620 = vpop.f32.mrb[0].mxu0
        %v1621 = vadd.f32 %v1320, %v1620
        %v1622 = vpop.f32.mrb[0].mxu0
        %v1623 = vadd.f32 %v1324, %v1622
        %v1624 = vpop.f32.mrb[0].mxu0
        %v1625 = vadd.f32 %v1320, %v1624
        %v1626 = vpop.f32.mrb[0].mxu0
        %v1627 = vadd.f32 %v1324, %v1626
        %1628 = vmatprep.mubr.bf16.mxu0 0
        %1629 = vmatmul.mubr.bf16.gmra.mrb[0].mxu0 %v1466
        %v1630 = vpop.f32.mrb[0].mxu0
        %v1631 = vadd.f32 %v1320, %v1630
        %v1632 = vpop.f32.mrb[0].mxu0
        %v1633 = vadd.f32 %v1324, %v1632
        %v1634 = vpop.f32.mrb[0].mxu0
        %v1635 = vadd.f32 %v1320, %v1634
        %v1636 = vpop.f32.mrb[0].mxu0
        %v1637 = vadd.f32 %v1324, %v1636
        %1638 = vmatprep.mubr.bf16.mxu0 0
        %1639 = vmatmul.mubr.bf16.gmra.mrb[0].mxu0 %v1469
        %v1640 = vpop.f32.mrb[0].mxu0
        %v1641 = vadd.f32 %v1320, %v1640
        %v1642 = vpop.f32.mrb[0].mxu0
        %v1643 = vadd.f32 %v1324, %v1642
        %v1644 = vpop.f32.mrb[0].mxu0
        %v1645 = vadd.f32 %v1320, %v1644
        %v1646 = vpop.f32.mrb[0].mxu0
        %v1647 = vadd.f32 %v1324, %v1646
        %1648 = vmatprep.mubr.bf16.mxu0 0
        %1649 = vmatmul.mubr.bf16.gmra.mrb[0].mxu0 %v1472
        %v1650 = vpop.f32.mrb[0].mxu0
        %v1651 = vadd.f32 %v1320, %v1650
        %v1652 = vpop.f32.mrb[0].mxu0
        %v1653 = vadd.f32 %v1324, %v1652
        %v1654 = vpop.f32.mrb[0].mxu0
        %v1655 = vadd.f32 %v1320, %v1654
        %v1656 = vpop.f32.mrb[0].mxu0
        %v1657 = vadd.f32 %v1324, %v1656
        %1658 = vmatprep.mubr.bf16.mxu0 0
        %1659 = vmatmul.mubr.bf16.gmra.mrb[0].mxu0 %v1475
        %v1660 = vpop.f32.mrb[0].mxu0
        %v1661 = vadd.f32 %v1320, %v1660
        %v1662 = vpop.f32.mrb[0].mxu0
        %v1663 = vadd.f32 %v1324, %v1662
        %v1664 = vpop.f32.mrb[0].mxu0
        %v1665 = vadd.f32 %v1320, %v1664
        %v1666 = vpop.f32.mrb[0].mxu0
        %v1667 = vadd.f32 %v1324, %v1666
        %1668 = vmatprep.mubr.bf16.mxu0 0
        %1669 = vmatmul.mubr.bf16.gmra.mrb[0].mxu0 %v1478
        %v1670 = vpop.f32.mrb[0].mxu0
        %v1671 = vadd.f32 %v1320, %v1670
        %v1672 = vpop.f32.mrb[0].mxu0
        %v1673 = vadd.f32 %v1324, %v1672
        %v1674 = vpop.f32.mrb[0].mxu0
        %v1675 = vadd.f32 %v1320, %v1674
        %v1676 = vpop.f32.mrb[0].mxu0
        %v1677 = vadd.f32 %v1324, %v1676
        %1678 = vdwg.mxu0
        %v1679 = vmax.f32 %v1521, 0.0
        %v1680 = vmax.f32 %v1523, 0.0
        %v1681 = vmax.f32 %v1525, 0.0
        %v1682 = vmax.f32 %v1527, 0.0
        %v1683 = vmax.f32 %v1531, 0.0
        %v1684 = vmax.f32 %v1533, 0.0
        %v1685 = vmax.f32 %v1535, 0.0
        %v1686 = vmax.f32 %v1537, 0.0
        %v1687 = vmax.f32 %v1541, 0.0
        %v1688 = vmax.f32 %v1543, 0.0
        %v1689 = vmax.f32 %v1545, 0.0
        %v1690 = vmax.f32 %v1547, 0.0
        %v1691 = vmax.f32 %v1551, 0.0
        %v1692 = vmax.f32 %v1553, 0.0
        %v1693 = vmax.f32 %v1555, 0.0
        %v1694 = vmax.f32 %v1557, 0.0
        %v1695 = vmax.f32 %v1561, 0.0
        %v1696 = vmax.f32 %v1563, 0.0
        %v1697 = vmax.f32 %v1565, 0.0
        %v1698 = vmax.f32 %v1567, 0.0
        %v1699 = vmax.f32 %v1571, 0.0
        %v1700 = vmax.f32 %v1573, 0.0
        %v1701 = vmax.f32 %v1575, 0.0
        %v1702 = vmax.f32 %v1577, 0.0
        %v1703 = vmax.f32 %v1581, 0.0
        %v1704 = vmax.f32 %v1583, 0.0
        %v1705 = vmax.f32 %v1585, 0.0
        %v1706 = vmax.f32 %v1587, 0.0
        %v1707 = vmax.f32 %v1591, 0.0
        %v1708 = vmax.f32 %v1593, 0.0
        %v1709 = vmax.f32 %v1595, 0.0
        %v1710 = vmax.f32 %v1597, 0.0
        %v1711 = vmax.f32 %v1601, 0.0
        %v1712 = vmax.f32 %v1603, 0.0
        %v1713 = vmax.f32 %v1605, 0.0
        %v1714 = vmax.f32 %v1607, 0.0
        %v1715 = vmax.f32 %v1611, 0.0
        %v1716 = vmax.f32 %v1613, 0.0
        %v1717 = vmax.f32 %v1615, 0.0
        %v1718 = vmax.f32 %v1617, 0.0
        %v1719 = vmax.f32 %v1621, 0.0
        %v1720 = vmax.f32 %v1623, 0.0
        %v1721 = vmax.f32 %v1625, 0.0
        %v1722 = vmax.f32 %v1627, 0.0
        %v1723 = vmax.f32 %v1631, 0.0
        %v1724 = vmax.f32 %v1633, 0.0
        %v1725 = vmax.f32 %v1635, 0.0
        %v1726 = vmax.f32 %v1637, 0.0
        %v1727 = vmax.f32 %v1641, 0.0
        %v1728 = vmax.f32 %v1643, 0.0
        %v1729 = vmax.f32 %v1645, 0.0
        %v1730 = vmax.f32 %v1647, 0.0
        %v1731 = vmax.f32 %v1651, 0.0
        %v1732 = vmax.f32 %v1653, 0.0
        %v1733 = vmax.f32 %v1655, 0.0
        %v1734 = vmax.f32 %v1657, 0.0
        %v1735 = vmax.f32 %v1661, 0.0
        %v1736 = vmax.f32 %v1663, 0.0
        %v1737 = vmax.f32 %v1665, 0.0
        %v1738 = vmax.f32 %v1667, 0.0
        %v1739 = vmax.f32 %v1671, 0.0
        %v1740 = vmax.f32 %v1673, 0.0
        %v1741 = vmax.f32 %v1675, 0.0
        %v1742 = vmax.f32 %v1677, 0.0
        %1743 = vst [vmem:[%s201 + $0x20] sm:$0xff] %v1679
        %1744 = vst [vmem:[%s201 + $0x28] sm:$0xff] %v1680
        %1745 = vst [vmem:[%s201 + $0x60] sm:$0xff] %v1681
        %1746 = vst [vmem:[%s201 + $0x68] sm:$0xff] %v1682
        %1747 = vst [vmem:[%s201 + $0xa0] sm:$0xff] %v1683
        %1748 = vst [vmem:[%s201 + $0xa8] sm:$0xff] %v1684
        %1749 = vst [vmem:[%s201 + $0xe0] sm:$0xff] %v1685
        %1750 = vst [vmem:[%s201 + $0xe8] sm:$0xff] %v1686
        %1751 = vst [vmem:[%s201 + $0x120] sm:$0xff] %v1687
        %1752 = vst [vmem:[%s201 + $0x128] sm:$0xff] %v1688
        %1753 = vst [vmem:[%s201 + $0x160] sm:$0xff] %v1689
        %1754 = vst [vmem:[%s201 + $0x168] sm:$0xff] %v1690
        %1755 = vst [vmem:[%s201 + $0x1a0] sm:$0xff] %v1691
        %1756 = vst [vmem:[%s201 + $0x1a8] sm:$0xff] %v1692
        %1757 = vst [vmem:[%s201 + $0x1e0] sm:$0xff] %v1693
        %1758 = vst [vmem:[%s201 + $0x1e8] sm:$0xff] %v1694
        %1759 = vst [vmem:[%s201 + $0x220] sm:$0xff] %v1695
        %1760 = vst [vmem:[%s201 + $0x228] sm:$0xff] %v1696
        %1761 = vst [vmem:[%s201 + $0x260] sm:$0xff] %v1697
        %1762 = vst [vmem:[%s201 + $0x268] sm:$0xff] %v1698
        %1763 = vst [vmem:[%s201 + $0x2a0] sm:$0xff] %v1699
        %1764 = vst [vmem:[%s201 + $0x2a8] sm:$0xff] %v1700
        %1765 = vst [vmem:[%s201 + $0x2e0] sm:$0xff] %v1701
        %1766 = vst [vmem:[%s201 + $0x2e8] sm:$0xff] %v1702
        %1767 = vst [vmem:[%s201 + $0x320] sm:$0xff] %v1703
        %1768 = vst [vmem:[%s201 + $0x328] sm:$0xff] %v1704
        %1769 = vst [vmem:[%s201 + $0x360] sm:$0xff] %v1705
        %1770 = vst [vmem:[%s201 + $0x368] sm:$0xff] %v1706
        %1771 = vst [vmem:[%s201 + $0x3a0] sm:$0xff] %v1707
        %1772 = vst [vmem:[%s201 + $0x3a8] sm:$0xff] %v1708
        %1773 = vst [vmem:[%s201 + $0x3e0] sm:$0xff] %v1709
        %1774 = vst [vmem:[%s201 + $0x3e8] sm:$0xff] %v1710
        %1775 = vst [vmem:[%s201 + $0x420] sm:$0xff] %v1711
        %1776 = vst [vmem:[%s201 + $0x428] sm:$0xff] %v1712
        %1777 = vst [vmem:[%s201 + $0x460] sm:$0xff] %v1713
        %1778 = vst [vmem:[%s201 + $0x468] sm:$0xff] %v1714
        %1779 = vst [vmem:[%s201 + $0x4a0] sm:$0xff] %v1715
        %1780 = vst [vmem:[%s201 + $0x4a8] sm:$0xff] %v1716
        %1781 = vst [vmem:[%s201 + $0x4e0] sm:$0xff] %v1717
        %1782 = vst [vmem:[%s201 + $0x4e8] sm:$0xff] %v1718
        %1783 = vst [vmem:[%s201 + $0x520] sm:$0xff] %v1719
        %1784 = vst [vmem:[%s201 + $0x528] sm:$0xff] %v1720
        %1785 = vst [vmem:[%s201 + $0x560] sm:$0xff] %v1721
        %1786 = vst [vmem:[%s201 + $0x568] sm:$0xff] %v1722
        %1787 = vst [vmem:[%s201 + $0x5a0] sm:$0xff] %v1723
        %1788 = vst [vmem:[%s201 + $0x5a8] sm:$0xff] %v1724
        %1789 = vst [vmem:[%s201 + $0x5e0] sm:$0xff] %v1725
        %1790 = vst [vmem:[%s201 + $0x5e8] sm:$0xff] %v1726
        %1791 = vst [vmem:[%s201 + $0x620] sm:$0xff] %v1727
        %1792 = vst [vmem:[%s201 + $0x628] sm:$0xff] %v1728
        %1793 = vst [vmem:[%s201 + $0x660] sm:$0xff] %v1729
        %1794 = vst [vmem:[%s201 + $0x668] sm:$0xff] %v1730
        %1795 = vst [vmem:[%s201 + $0x6a0] sm:$0xff] %v1731
        %1796 = vst [vmem:[%s201 + $0x6a8] sm:$0xff] %v1732
        %1797 = vst [vmem:[%s201 + $0x6e0] sm:$0xff] %v1733
        %1798 = vst [vmem:[%s201 + $0x6e8] sm:$0xff] %v1734
        %1799 = vst [vmem:[%s201 + $0x720] sm:$0xff] %v1735
        %1800 = vst [vmem:[%s201 + $0x728] sm:$0xff] %v1736
        %1801 = vst [vmem:[%s201 + $0x760] sm:$0xff] %v1737
        %1802 = vst [vmem:[%s201 + $0x768] sm:$0xff] %v1738
        %1803 = vst [vmem:[%s201 + $0x7a0] sm:$0xff] %v1739
        %1804 = vst [vmem:[%s201 + $0x7a8] sm:$0xff] %v1740
        %1805 = vst [vmem:[%s201 + $0x7e0] sm:$0xff] %v1741
        %1806 = vst [vmem:[%s201 + $0x7e8] sm:$0xff] %v1742
        %s1807 = scalar_lea.vmem %s210, 384
        %v1808 = vld [vmem:[%s1807] sm:$0xf]
        %v1809 = vld [vmem:[%s1807 + $0x4] sm:$0xf]
        %v1810 = vld [vmem:[%s1807 + $0x8] sm:$0xf]
        %v1811 = vld [vmem:[%s1807 + $0xc] sm:$0xf]
        %v1812 = vld [vmem:[%s1807 + $0x10] sm:$0xf]
        %v1813 = vld [vmem:[%s1807 + $0x14] sm:$0xf]
        %v1814 = vld [vmem:[%s1807 + $0x18] sm:$0xf]
        %v1815 = vld [vmem:[%s1807 + $0x1c] sm:$0xf]
        %v1816 = vld [vmem:[%s1807 + $0x20] sm:$0xf]
        %v1817 = vld [vmem:[%s1807 + $0x24] sm:$0xf]
        %v1818 = vld [vmem:[%s1807 + $0x28] sm:$0xf]
        %v1819 = vld [vmem:[%s1807 + $0x2c] sm:$0xf]
        %v1820 = vld [vmem:[%s1807 + $0x30] sm:$0xf]
        %v1821 = vld [vmem:[%s1807 + $0x34] sm:$0xf]
        %v1822 = vld [vmem:[%s1807 + $0x38] sm:$0xf]
        %v1823 = vld [vmem:[%s1807 + $0x3c] sm:$0xf]
        %v1824 = vld [vmem:[%s1807 + $0x40] sm:$0xf]
        %v1825 = vld [vmem:[%s1807 + $0x44] sm:$0xf]
        %v1826 = vld [vmem:[%s1807 + $0x48] sm:$0xf]
        %v1827 = vld [vmem:[%s1807 + $0x4c] sm:$0xf]
        %v1828 = vld [vmem:[%s1807 + $0x50] sm:$0xf]
        %v1829 = vld [vmem:[%s1807 + $0x54] sm:$0xf]
        %v1830 = vld [vmem:[%s1807 + $0x58] sm:$0xf]
        %v1831 = vld [vmem:[%s1807 + $0x5c] sm:$0xf]
        %v1832 = vld [vmem:[%s1807 + $0x60] sm:$0xf]
        %v1833 = vld [vmem:[%s1807 + $0x64] sm:$0xf]
        %v1834 = vld [vmem:[%s1807 + $0x68] sm:$0xf]
        %v1835 = vld [vmem:[%s1807 + $0x6c] sm:$0xf]
        %v1836 = vld [vmem:[%s1807 + $0x70] sm:$0xf]
        %v1837 = vld [vmem:[%s1807 + $0x74] sm:$0xf]
        %v1838 = vld [vmem:[%s1807 + $0x78] sm:$0xf]
        %v1839 = vld [vmem:[%s1807 + $0x7c] sm:$0xf]
        %s1840 = scalar_lea.vmem %s1, 120
        %v1841 = vld [vmem:[%s1840] sm:$0xff]
        %v1842 = vld [vmem:[%s1840 + $0x8] sm:$0xff]
        %v1843 = vld [vmem:[%s1840 + $0x10] sm:$0xff]
        %v1844 = vld [vmem:[%s1840 + $0x18] sm:$0xff]
        %v1845 = vld [vmem:[%s1840 + $0x20] sm:$0x33]
        %v1846 = vld [vmem:[#allocation2 + $0x6] sm:$0x3]
        %v1848 = vlaneseq
        %v1849 = vshrl.u32 %v1848, 7
        %v1850 = vsub.s32 0, %v1849
        %v1851 = vrot.slane %v1846, %v1850
        %v1852 = vlaneseq
        %v1853 = vshrl.u32 %v1852, 7
        %v1854 = vsub.s32 1, %v1853
        %v1855 = vrot.slane %v1846, %v1854
        %v1890 = vunpack.c.l.b16 %v1808
        %v1891 = vunpack.c.l.b16 %v1809
        %v1892 = vunpack.c.l.b16 %v1810
        %v1893 = vunpack.c.l.b16 %v1811
        %v1894 = vunpack.c.l.b16 %v1812
        %v1895 = vunpack.c.l.b16 %v1813
        %v1896 = vunpack.c.l.b16 %v1814
        %v1897 = vunpack.c.l.b16 %v1815
        %v1898 = vunpack.c.l.b16 %v1816
        %v1899 = vunpack.c.l.b16 %v1817
        %v1900 = vunpack.c.l.b16 %v1818
        %v1901 = vunpack.c.l.b16 %v1819
        %v1902 = vunpack.c.l.b16 %v1820
        %v1903 = vunpack.c.l.b16 %v1821
        %v1904 = vunpack.c.l.b16 %v1822
        %v1905 = vunpack.c.l.b16 %v1823
        %v1906 = vunpack.c.l.b16 %v1824
        %v1907 = vunpack.c.l.b16 %v1825
        %v1908 = vunpack.c.l.b16 %v1826
        %v1909 = vunpack.c.l.b16 %v1827
        %v1910 = vunpack.c.l.b16 %v1828
        %v1911 = vunpack.c.l.b16 %v1829
        %v1912 = vunpack.c.l.b16 %v1830
        %v1913 = vunpack.c.l.b16 %v1831
        %v1914 = vunpack.c.l.b16 %v1832
        %v1915 = vunpack.c.l.b16 %v1833
        %v1916 = vunpack.c.l.b16 %v1834
        %v1917 = vunpack.c.l.b16 %v1835
        %v1918 = vunpack.c.l.b16 %v1836
        %v1919 = vunpack.c.l.b16 %v1837
        %v1920 = vunpack.c.l.b16 %v1838
        %v1921 = vunpack.c.l.b16 %v1839
        %v1922 = vpack.c.b16 %v1891, %v1890
        %v1923 = vpack.c.b16 %v1893, %v1892
        %v1924 = vpack.c.b16 %v1895, %v1894
        %v1925 = vpack.c.b16 %v1897, %v1896
        %v1926 = vpack.c.b16 %v1899, %v1898
        %v1927 = vpack.c.b16 %v1901, %v1900
        %v1928 = vpack.c.b16 %v1903, %v1902
        %v1929 = vpack.c.b16 %v1905, %v1904
        %v1930 = vpack.c.b16 %v1907, %v1906
        %v1931 = vpack.c.b16 %v1909, %v1908
        %v1932 = vpack.c.b16 %v1911, %v1910
        %v1933 = vpack.c.b16 %v1913, %v1912
        %v1934 = vpack.c.b16 %v1915, %v1914
        %v1935 = vpack.c.b16 %v1917, %v1916
        %v1936 = vpack.c.b16 %v1919, %v1918
        %v1937 = vpack.c.b16 %v1921, %v1920
        %v1943 = vunpack.c.l.b16 %v1841
        %v1944 = vunpack.c.h.b16 %v1841
        %v1945 = vunpack.c.l.b16 %v1842
        %v1946 = vunpack.c.h.b16 %v1842
        %v1947 = vunpack.c.l.b16 %v1843
        %v1948 = vunpack.c.h.b16 %v1843
        %v1949 = vunpack.c.l.b16 %v1844
        %v1950 = vunpack.c.h.b16 %v1844
        %v1951 = vunpack.c.l.b16 %v1845
        %v1952 = vunpack.c.h.b16 %v1845
        %v1953 = vpack.c.b16 %v1945, %v1943
        %v1954 = vpack.c.b16 %v1946, %v1944
        %v1955 = vpack.c.b16 %v1949, %v1947
        %v1956 = vpack.c.b16 %v1950, %v1948
        %v1957 = vpack.c.b16 %v1951, %v1951
        %v1958 = vpack.c.b16 %v1952, %v1952
        %v1964 = vsel %vm368, %v1922, 0
        %v1967 = vsel %vm368, %v1923, 0
        %v1970 = vsel %vm368, %v1924, 0
        %v1973 = vsel %vm368, %v1925, 0
        %v1976 = vsel %vm368, %v1926, 0
        %v1979 = vsel %vm368, %v1927, 0
        %v1982 = vsel %vm368, %v1928, 0
        %v1985 = vsel %vm368, %v1929, 0
        %v1988 = vsel %vm368, %v1930, 0
        %v1991 = vsel %vm368, %v1931, 0
        %v1994 = vsel %vm368, %v1932, 0
        %v1997 = vsel %vm368, %v1933, 0
        %v2000 = vsel %vm368, %v1934, 0
        %v2003 = vsel %vm368, %v1935, 0
        %v2006 = vsel %vm368, %v1936, 0
        %v2009 = vsel %vm368, %v1937, 0
        %v2012 = vsel %vm417, %v1957, 0
        %v2015 = vsel %vm417, %v1958, 0
        %2017 = vmatprep.subr.bf16.mxu0 %v1954
        %2018 = vmatpush1.bf16.msra.mxu0 %v1953
        %2019 = vmatprep.subr.bf16.mxu0 %v1956
        %2020 = vmatpush1.bf16.msra.mxu0 %v1955
        %2021 = vmatprep.subr.bf16.mxu0 %v2015
        %2022 = vmatpush1.bf16.msra.mxu0 %v2012
        %2023 = vmatprep.subr.bf16.mxu0 0
        %2024 = vmatpush1.bf16.msra.mxu0 0
        %2025 = vmatprep.subr.bf16.mxu0 0
        %2026 = vmatpush1.bf16.msra.mxu0 0
        %2027 = vmatprep.subr.bf16.mxu0 0
        %2028 = vmatpush1.bf16.msra.mxu0 0
        %2029 = vmatprep.subr.bf16.mxu0 0
        %2030 = vmatpush1.bf16.msra.mxu0 0
        %2031 = vmatprep.subr.bf16.mxu0 0
        %2032 = vmatpush1.bf16.msra.mxu0 0
        %2033 = vmatprep.subr.bf16.mxu0 0
        %2034 = vmatpush1.bf16.msra.mxu0 0
        %2035 = vmatprep.subr.bf16.mxu0 0
        %2036 = vmatpush1.bf16.msra.mxu0 0
        %2037 = vmatprep.subr.bf16.mxu0 0
        %2038 = vmatpush1.bf16.msra.mxu0 0
        %2039 = vmatprep.subr.bf16.mxu0 0
        %2040 = vmatpush1.bf16.msra.mxu0 0
        %2041 = vmatprep.subr.bf16.mxu0 0
        %2042 = vmatpush1.bf16.msra.mxu0 0
        %2043 = vmatprep.subr.bf16.mxu0 0
        %2044 = vmatpush1.bf16.msra.mxu0 0
        %2045 = vmatprep.subr.bf16.mxu0 0
        %2046 = vmatpush1.bf16.msra.mxu0 0
        %2047 = vmatprep.subr.bf16.mxu0 0
        %2048 = vmatpush1.bf16.msra.mxu0 0
        %2049 = vmatprep.mubr.bf16.mxu0 0
        %2050 = vmatmul.mubr.bf16.gmra.mrb[0].mxu0 %v1964
        %v2051 = vpop.f32.mrb[0].mxu0
        %v2052 = vadd.f32 %v1851, %v2051
        %v2053 = vpop.f32.mrb[0].mxu0
        %v2054 = vadd.f32 %v1855, %v2053
        %v2055 = vpop.f32.mrb[0].mxu0
        %v2056 = vadd.f32 %v1851, %v2055
        %v2057 = vpop.f32.mrb[0].mxu0
        %v2058 = vadd.f32 %v1855, %v2057
        %2059 = vmatprep.mubr.bf16.mxu0 0
        %2060 = vmatmul.mubr.bf16.gmra.mrb[0].mxu0 %v1967
        %v2061 = vpop.f32.mrb[0].mxu0
        %v2062 = vadd.f32 %v1851, %v2061
        %v2063 = vpop.f32.mrb[0].mxu0
        %v2064 = vadd.f32 %v1855, %v2063
        %v2065 = vpop.f32.mrb[0].mxu0
        %v2066 = vadd.f32 %v1851, %v2065
        %v2067 = vpop.f32.mrb[0].mxu0
        %v2068 = vadd.f32 %v1855, %v2067
        %2069 = vmatprep.mubr.bf16.mxu0 0
        %2070 = vmatmul.mubr.bf16.gmra.mrb[0].mxu0 %v1970
        %v2071 = vpop.f32.mrb[0].mxu0
        %v2072 = vadd.f32 %v1851, %v2071
        %v2073 = vpop.f32.mrb[0].mxu0
        %v2074 = vadd.f32 %v1855, %v2073
        %v2075 = vpop.f32.mrb[0].mxu0
        %v2076 = vadd.f32 %v1851, %v2075
        %v2077 = vpop.f32.mrb[0].mxu0
        %v2078 = vadd.f32 %v1855, %v2077
        %2079 = vmatprep.mubr.bf16.mxu0 0
        %2080 = vmatmul.mubr.bf16.gmra.mrb[0].mxu0 %v1973
        %v2081 = vpop.f32.mrb[0].mxu0
        %v2082 = vadd.f32 %v1851, %v2081
        %v2083 = vpop.f32.mrb[0].mxu0
        %v2084 = vadd.f32 %v1855, %v2083
        %v2085 = vpop.f32.mrb[0].mxu0
        %v2086 = vadd.f32 %v1851, %v2085
        %v2087 = vpop.f32.mrb[0].mxu0
        %v2088 = vadd.f32 %v1855, %v2087
        %2089 = vmatprep.mubr.bf16.mxu0 0
        %2090 = vmatmul.mubr.bf16.gmra.mrb[0].mxu0 %v1976
        %v2091 = vpop.f32.mrb[0].mxu0
        %v2092 = vadd.f32 %v1851, %v2091
        %v2093 = vpop.f32.mrb[0].mxu0
        %v2094 = vadd.f32 %v1855, %v2093
        %v2095 = vpop.f32.mrb[0].mxu0
        %v2096 = vadd.f32 %v1851, %v2095
        %v2097 = vpop.f32.mrb[0].mxu0
        %v2098 = vadd.f32 %v1855, %v2097
        %2099 = vmatprep.mubr.bf16.mxu0 0
        %2100 = vmatmul.mubr.bf16.gmra.mrb[0].mxu0 %v1979
        %v2101 = vpop.f32.mrb[0].mxu0
        %v2102 = vadd.f32 %v1851, %v2101
        %v2103 = vpop.f32.mrb[0].mxu0
        %v2104 = vadd.f32 %v1855, %v2103
        %v2105 = vpop.f32.mrb[0].mxu0
        %v2106 = vadd.f32 %v1851, %v2105
        %v2107 = vpop.f32.mrb[0].mxu0
        %v2108 = vadd.f32 %v1855, %v2107
        %2109 = vmatprep.mubr.bf16.mxu0 0
        %2110 = vmatmul.mubr.bf16.gmra.mrb[0].mxu0 %v1982
        %v2111 = vpop.f32.mrb[0].mxu0
        %v2112 = vadd.f32 %v1851, %v2111
        %v2113 = vpop.f32.mrb[0].mxu0
        %v2114 = vadd.f32 %v1855, %v2113
        %v2115 = vpop.f32.mrb[0].mxu0
        %v2116 = vadd.f32 %v1851, %v2115
        %v2117 = vpop.f32.mrb[0].mxu0
        %v2118 = vadd.f32 %v1855, %v2117
        %2119 = vmatprep.mubr.bf16.mxu0 0
        %2120 = vmatmul.mubr.bf16.gmra.mrb[0].mxu0 %v1985
        %v2121 = vpop.f32.mrb[0].mxu0
        %v2122 = vadd.f32 %v1851, %v2121
        %v2123 = vpop.f32.mrb[0].mxu0
        %v2124 = vadd.f32 %v1855, %v2123
        %v2125 = vpop.f32.mrb[0].mxu0
        %v2126 = vadd.f32 %v1851, %v2125
        %v2127 = vpop.f32.mrb[0].mxu0
        %v2128 = vadd.f32 %v1855, %v2127
        %2129 = vmatprep.mubr.bf16.mxu0 0
        %2130 = vmatmul.mubr.bf16.gmra.mrb[0].mxu0 %v1988
        %v2131 = vpop.f32.mrb[0].mxu0
        %v2132 = vadd.f32 %v1851, %v2131
        %v2133 = vpop.f32.mrb[0].mxu0
        %v2134 = vadd.f32 %v1855, %v2133
        %v2135 = vpop.f32.mrb[0].mxu0
        %v2136 = vadd.f32 %v1851, %v2135
        %v2137 = vpop.f32.mrb[0].mxu0
        %v2138 = vadd.f32 %v1855, %v2137
        %2139 = vmatprep.mubr.bf16.mxu0 0
        %2140 = vmatmul.mubr.bf16.gmra.mrb[0].mxu0 %v1991
        %v2141 = vpop.f32.mrb[0].mxu0
        %v2142 = vadd.f32 %v1851, %v2141
        %v2143 = vpop.f32.mrb[0].mxu0
        %v2144 = vadd.f32 %v1855, %v2143
        %v2145 = vpop.f32.mrb[0].mxu0
        %v2146 = vadd.f32 %v1851, %v2145
        %v2147 = vpop.f32.mrb[0].mxu0
        %v2148 = vadd.f32 %v1855, %v2147
        %2149 = vmatprep.mubr.bf16.mxu0 0
        %2150 = vmatmul.mubr.bf16.gmra.mrb[0].mxu0 %v1994
        %v2151 = vpop.f32.mrb[0].mxu0
        %v2152 = vadd.f32 %v1851, %v2151
        %v2153 = vpop.f32.mrb[0].mxu0
        %v2154 = vadd.f32 %v1855, %v2153
        %v2155 = vpop.f32.mrb[0].mxu0
        %v2156 = vadd.f32 %v1851, %v2155
        %v2157 = vpop.f32.mrb[0].mxu0
        %v2158 = vadd.f32 %v1855, %v2157
        %2159 = vmatprep.mubr.bf16.mxu0 0
        %2160 = vmatmul.mubr.bf16.gmra.mrb[0].mxu0 %v1997
        %v2161 = vpop.f32.mrb[0].mxu0
        %v2162 = vadd.f32 %v1851, %v2161
        %v2163 = vpop.f32.mrb[0].mxu0
        %v2164 = vadd.f32 %v1855, %v2163
        %v2165 = vpop.f32.mrb[0].mxu0
        %v2166 = vadd.f32 %v1851, %v2165
        %v2167 = vpop.f32.mrb[0].mxu0
        %v2168 = vadd.f32 %v1855, %v2167
        %2169 = vmatprep.mubr.bf16.mxu0 0
        %2170 = vmatmul.mubr.bf16.gmra.mrb[0].mxu0 %v2000
        %v2171 = vpop.f32.mrb[0].mxu0
        %v2172 = vadd.f32 %v1851, %v2171
        %v2173 = vpop.f32.mrb[0].mxu0
        %v2174 = vadd.f32 %v1855, %v2173
        %v2175 = vpop.f32.mrb[0].mxu0
        %v2176 = vadd.f32 %v1851, %v2175
        %v2177 = vpop.f32.mrb[0].mxu0
        %v2178 = vadd.f32 %v1855, %v2177
        %2179 = vmatprep.mubr.bf16.mxu0 0
        %2180 = vmatmul.mubr.bf16.gmra.mrb[0].mxu0 %v2003
        %v2181 = vpop.f32.mrb[0].mxu0
        %v2182 = vadd.f32 %v1851, %v2181
        %v2183 = vpop.f32.mrb[0].mxu0
        %v2184 = vadd.f32 %v1855, %v2183
        %v2185 = vpop.f32.mrb[0].mxu0
        %v2186 = vadd.f32 %v1851, %v2185
        %v2187 = vpop.f32.mrb[0].mxu0
        %v2188 = vadd.f32 %v1855, %v2187
        %2189 = vmatprep.mubr.bf16.mxu0 0
        %2190 = vmatmul.mubr.bf16.gmra.mrb[0].mxu0 %v2006
        %v2191 = vpop.f32.mrb[0].mxu0
        %v2192 = vadd.f32 %v1851, %v2191
        %v2193 = vpop.f32.mrb[0].mxu0
        %v2194 = vadd.f32 %v1855, %v2193
        %v2195 = vpop.f32.mrb[0].mxu0
        %v2196 = vadd.f32 %v1851, %v2195
        %v2197 = vpop.f32.mrb[0].mxu0
        %v2198 = vadd.f32 %v1855, %v2197
        %2199 = vmatprep.mubr.bf16.mxu0 0
        %2200 = vmatmul.mubr.bf16.gmra.mrb[0].mxu0 %v2009
        %v2201 = vpop.f32.mrb[0].mxu0
        %v2202 = vadd.f32 %v1851, %v2201
        %v2203 = vpop.f32.mrb[0].mxu0
        %v2204 = vadd.f32 %v1855, %v2203
        %v2205 = vpop.f32.mrb[0].mxu0
        %v2206 = vadd.f32 %v1851, %v2205
        %v2207 = vpop.f32.mrb[0].mxu0
        %v2208 = vadd.f32 %v1855, %v2207
        %2209 = vdwg.mxu0
        %v2210 = vmax.f32 %v2052, 0.0
        %v2211 = vmax.f32 %v2054, 0.0
        %v2212 = vmax.f32 %v2056, 0.0
        %v2213 = vmax.f32 %v2058, 0.0
        %v2214 = vmax.f32 %v2062, 0.0
        %v2215 = vmax.f32 %v2064, 0.0
        %v2216 = vmax.f32 %v2066, 0.0
        %v2217 = vmax.f32 %v2068, 0.0
        %v2218 = vmax.f32 %v2072, 0.0
        %v2219 = vmax.f32 %v2074, 0.0
        %v2220 = vmax.f32 %v2076, 0.0
        %v2221 = vmax.f32 %v2078, 0.0
        %v2222 = vmax.f32 %v2082, 0.0
        %v2223 = vmax.f32 %v2084, 0.0
        %v2224 = vmax.f32 %v2086, 0.0
        %v2225 = vmax.f32 %v2088, 0.0
        %v2226 = vmax.f32 %v2092, 0.0
        %v2227 = vmax.f32 %v2094, 0.0
        %v2228 = vmax.f32 %v2096, 0.0
        %v2229 = vmax.f32 %v2098, 0.0
        %v2230 = vmax.f32 %v2102, 0.0
        %v2231 = vmax.f32 %v2104, 0.0
        %v2232 = vmax.f32 %v2106, 0.0
        %v2233 = vmax.f32 %v2108, 0.0
        %v2234 = vmax.f32 %v2112, 0.0
        %v2235 = vmax.f32 %v2114, 0.0
        %v2236 = vmax.f32 %v2116, 0.0
        %v2237 = vmax.f32 %v2118, 0.0
        %v2238 = vmax.f32 %v2122, 0.0
        %v2239 = vmax.f32 %v2124, 0.0
        %v2240 = vmax.f32 %v2126, 0.0
        %v2241 = vmax.f32 %v2128, 0.0
        %v2242 = vmax.f32 %v2132, 0.0
        %v2243 = vmax.f32 %v2134, 0.0
        %v2244 = vmax.f32 %v2136, 0.0
        %v2245 = vmax.f32 %v2138, 0.0
        %v2246 = vmax.f32 %v2142, 0.0
        %v2247 = vmax.f32 %v2144, 0.0
        %v2248 = vmax.f32 %v2146, 0.0
        %v2249 = vmax.f32 %v2148, 0.0
        %v2250 = vmax.f32 %v2152, 0.0
        %v2251 = vmax.f32 %v2154, 0.0
        %v2252 = vmax.f32 %v2156, 0.0
        %v2253 = vmax.f32 %v2158, 0.0
        %v2254 = vmax.f32 %v2162, 0.0
        %v2255 = vmax.f32 %v2164, 0.0
        %v2256 = vmax.f32 %v2166, 0.0
        %v2257 = vmax.f32 %v2168, 0.0
        %v2258 = vmax.f32 %v2172, 0.0
        %v2259 = vmax.f32 %v2174, 0.0
        %v2260 = vmax.f32 %v2176, 0.0
        %v2261 = vmax.f32 %v2178, 0.0
        %v2262 = vmax.f32 %v2182, 0.0
        %v2263 = vmax.f32 %v2184, 0.0
        %v2264 = vmax.f32 %v2186, 0.0
        %v2265 = vmax.f32 %v2188, 0.0
        %v2266 = vmax.f32 %v2192, 0.0
        %v2267 = vmax.f32 %v2194, 0.0
        %v2268 = vmax.f32 %v2196, 0.0
        %v2269 = vmax.f32 %v2198, 0.0
        %v2270 = vmax.f32 %v2202, 0.0
        %v2271 = vmax.f32 %v2204, 0.0
        %v2272 = vmax.f32 %v2206, 0.0
        %v2273 = vmax.f32 %v2208, 0.0
        %2274 = vst [vmem:[%s201 + $0x30] sm:$0xff] %v2210
        %2275 = vst [vmem:[%s201 + $0x38] sm:$0xff] %v2211
        %2276 = vst [vmem:[%s201 + $0x70] sm:$0xff] %v2212
        %2277 = vst [vmem:[%s201 + $0x78] sm:$0xff] %v2213
        %2278 = vst [vmem:[%s201 + $0xb0] sm:$0xff] %v2214
        %2279 = vst [vmem:[%s201 + $0xb8] sm:$0xff] %v2215
        %2280 = vst [vmem:[%s201 + $0xf0] sm:$0xff] %v2216
        %2281 = vst [vmem:[%s201 + $0xf8] sm:$0xff] %v2217
        %2282 = vst [vmem:[%s201 + $0x130] sm:$0xff] %v2218
        %2283 = vst [vmem:[%s201 + $0x138] sm:$0xff] %v2219
        %2284 = vst [vmem:[%s201 + $0x170] sm:$0xff] %v2220
        %2285 = vst [vmem:[%s201 + $0x178] sm:$0xff] %v2221
        %2286 = vst [vmem:[%s201 + $0x1b0] sm:$0xff] %v2222
        %2287 = vst [vmem:[%s201 + $0x1b8] sm:$0xff] %v2223
        %2288 = vst [vmem:[%s201 + $0x1f0] sm:$0xff] %v2224
        %2289 = vst [vmem:[%s201 + $0x1f8] sm:$0xff] %v2225
        %2290 = vst [vmem:[%s201 + $0x230] sm:$0xff] %v2226
        %2291 = vst [vmem:[%s201 + $0x238] sm:$0xff] %v2227
        %2292 = vst [vmem:[%s201 + $0x270] sm:$0xff] %v2228
        %2293 = vst [vmem:[%s201 + $0x278] sm:$0xff] %v2229
        %2294 = vst [vmem:[%s201 + $0x2b0] sm:$0xff] %v2230
        %2295 = vst [vmem:[%s201 + $0x2b8] sm:$0xff] %v2231
        %2296 = vst [vmem:[%s201 + $0x2f0] sm:$0xff] %v2232
        %2297 = vst [vmem:[%s201 + $0x2f8] sm:$0xff] %v2233
        %2298 = vst [vmem:[%s201 + $0x330] sm:$0xff] %v2234
        %2299 = vst [vmem:[%s201 + $0x338] sm:$0xff] %v2235
        %2300 = vst [vmem:[%s201 + $0x370] sm:$0xff] %v2236
        %2301 = vst [vmem:[%s201 + $0x378] sm:$0xff] %v2237
        %2302 = vst [vmem:[%s201 + $0x3b0] sm:$0xff] %v2238
        %2303 = vst [vmem:[%s201 + $0x3b8] sm:$0xff] %v2239
        %2304 = vst [vmem:[%s201 + $0x3f0] sm:$0xff] %v2240
        %2305 = vst [vmem:[%s201 + $0x3f8] sm:$0xff] %v2241
        %2306 = vst [vmem:[%s201 + $0x430] sm:$0xff] %v2242
        %2307 = vst [vmem:[%s201 + $0x438] sm:$0xff] %v2243
        %2308 = vst [vmem:[%s201 + $0x470] sm:$0xff] %v2244
        %2309 = vst [vmem:[%s201 + $0x478] sm:$0xff] %v2245
        %2310 = vst [vmem:[%s201 + $0x4b0] sm:$0xff] %v2246
        %2311 = vst [vmem:[%s201 + $0x4b8] sm:$0xff] %v2247
        %2312 = vst [vmem:[%s201 + $0x4f0] sm:$0xff] %v2248
        %2313 = vst [vmem:[%s201 + $0x4f8] sm:$0xff] %v2249
        %2314 = vst [vmem:[%s201 + $0x530] sm:$0xff] %v2250
        %2315 = vst [vmem:[%s201 + $0x538] sm:$0xff] %v2251
        %2316 = vst [vmem:[%s201 + $0x570] sm:$0xff] %v2252
        %2317 = vst [vmem:[%s201 + $0x578] sm:$0xff] %v2253
        %2318 = vst [vmem:[%s201 + $0x5b0] sm:$0xff] %v2254
        %2319 = vst [vmem:[%s201 + $0x5b8] sm:$0xff] %v2255
        %2320 = vst [vmem:[%s201 + $0x5f0] sm:$0xff] %v2256
        %2321 = vst [vmem:[%s201 + $0x5f8] sm:$0xff] %v2257
        %2322 = vst [vmem:[%s201 + $0x630] sm:$0xff] %v2258
        %2323 = vst [vmem:[%s201 + $0x638] sm:$0xff] %v2259
        %2324 = vst [vmem:[%s201 + $0x670] sm:$0xff] %v2260
        %2325 = vst [vmem:[%s201 + $0x678] sm:$0xff] %v2261
        %2326 = vst [vmem:[%s201 + $0x6b0] sm:$0xff] %v2262
        %2327 = vst [vmem:[%s201 + $0x6b8] sm:$0xff] %v2263
        %2328 = vst [vmem:[%s201 + $0x6f0] sm:$0xff] %v2264
        %2329 = vst [vmem:[%s201 + $0x6f8] sm:$0xff] %v2265
        %2330 = vst [vmem:[%s201 + $0x730] sm:$0xff] %v2266
        %2331 = vst [vmem:[%s201 + $0x738] sm:$0xff] %v2267
        %2332 = vst [vmem:[%s201 + $0x770] sm:$0xff] %v2268
        %2333 = vst [vmem:[%s201 + $0x778] sm:$0xff] %v2269
        %2334 = vst [vmem:[%s201 + $0x7b0] sm:$0xff] %v2270
        %2335 = vst [vmem:[%s201 + $0x7b8] sm:$0xff] %v2271
        %2336 = vst [vmem:[%s201 + $0x7f0] sm:$0xff] %v2272
        %2337 = vst [vmem:[%s201 + $0x7f8] sm:$0xff] %v2273
        %s2338 = sand.u32 %s110, 1
        %s2339 = scalar_lea.sflag [#allocation4], %s2338
        %s2340 = sand.u32 %s110, 1
        %s2341 = smul.addr %s2340, 2048
        %s2342 = scalar_lea.vmem [#allocation5], %s2341
        // Predicated region
        $region37: #{tpu_custom_call.1} parent=31 // pred_check
          %p2343 = pneg %p120
        $region38: #{tpu_custom_call.1} parent=31 // pred_check_branch
          %2345 = sbr.rel (%p2343) target = $region40
        $region39: #{tpu_custom_call.1} parent=31 // pred_region
          %s2346 = smul.u32 32, %s23
          %s2348 = ssub.s32 32768, 32768
          %2349 = vsyncadd %s2339, %s2348
          %s2350 = smul.addr %s2346, 8
          %s2351 = smul.addr %s22, 256
          %s2352 = sadd.s32 %s2350, %s2351
          %s2353 = smul.addr %s2352, 128
          %s2354 = scalar_lea.hbm %s3, %s2353
          %s2355 = sshll.u32 %s2342, 4
          %s2356 = int_to_ptr.vmem [resolvable:$true] %s2355
          %2361 = dma.vmem_to_hbm [thread:$0]  %s2356, 32768, %s2354, %s2339, 1024, 1024, 64
        $region40: #{tpu_custom_call.1} parent=31 // pred_fallthru
          _
      $region32: #{tpu_custom_call.1} parent=5 // pred_fallthru
        _
      %p2362 = scmp.le.s32.totalorder 2, %s13
      // Predicated region
      $region41: #{tpu_custom_call.1} parent=5 // pred_check
        %p2363 = pneg %p2362
      $region42: #{tpu_custom_call.1} parent=5 // pred_check_branch
        %2365 = sbr.rel (%p2363) target = $region44
      $region43: #{tpu_custom_call.1} parent=5 // pred_region
        %s2366 = ssub.s32 %s13, 2
        // Predicated region
        $region45: #{tpu_custom_call.1} parent=43 // pred_check
          %p2367 = pneg %p126
        $region46: #{tpu_custom_call.1} parent=43 // pred_check_branch
          %2369 = sbr.rel (%p2367) target = $region48
        $region47: #{tpu_custom_call.1} parent=43 // pred_region
          %s2370 = sand.u32 %s111, 1
          %s2371 = scalar_lea.sflag [#allocation4], %s2370
          %s2372 = sand.u32 %s111, 1
          %s2373 = smul.addr %s2372, 2048
          %s2374 = scalar_lea.vmem [#allocation5], %s2373
          %2375 = dma.done %s2371, 32768
        $region48: #{tpu_custom_call.1} parent=43 // pred_fallthru
          _
      $region44: #{tpu_custom_call.1} parent=5 // pred_fallthru
        _
    $region6: #{tpu_custom_call.1} parent=1 // loop_footer
      %s17 = sadd.s32 1, %s13
    $region7: #{tpu_custom_call.1} parent=1 // loop_footer_branch
      %12 = sbr.rel target = $region3
    $region8: #{tpu_custom_call.1} parent=1 // loop_exit
      _
    %2376 = vsyncpa [#allocation3], 1
    %s2377 = scalar_lea.sflag [#allocation3], 1
    %2378 = vsyncpa %s2377, 1
    %2379 = vsyncpa [#allocation4], 1
    %s2380 = scalar_lea.sflag [#allocation4], 1
    %2381 = vsyncpa %s2380, 1

</llo_original>
